<compile_context>
chip_gen: v7x
topology: tpu7x:2x2x1
jax: 0.10.0
libtpu: 0.0.40
codegen_flags: <defaults>
</compile_context>

<pallas_src>
import jax
import jax.numpy as jnp
from jax.experimental import pallas as pl
from jax.experimental.pallas import tpu as pltpu


def _round_up(n, m):
    return ((n + m - 1) // m) * m


def _sigmoid(z):
    return 1.0 / (1.0 + jnp.exp(-z))


def pack_params(w_ih, w_hh, b_ih, b_hh, w_dense, b_dense):
    """Pack PyTorch-layout LSTM + Linear params into one (R, C) f32 slab (single DMA).

    w_ih: (4H, S)  w_hh: (4H, H)  b_ih/b_hh: (4H,)   [gate order i, f, g, o]
    w_dense: (A, H)  b_dense: (A,)
    """
    four_h, S = w_ih.shape
    H = w_hh.shape[1]
    A = w_dense.shape[0]
    G = 4 * H
    C = max(_round_up(G, 128), _round_up(A, 128))

    off_whh = _round_up(S, 8)
    off_b = off_whh + _round_up(H, 8)
    off_wd = off_b + 8
    off_bd = off_wd + _round_up(H, 8)
    R = off_bd + 8

    slab = jnp.zeros((R, C), jnp.float32)
    slab = slab.at[0:S, 0:G].set(w_ih.T.astype(jnp.float32))                     # W_ih^T
    slab = slab.at[off_whh:off_whh + H, 0:G].set(w_hh.T.astype(jnp.float32))     # W_hh^T
    slab = slab.at[off_b, 0:G].set((b_ih + b_hh).astype(jnp.float32))            # combined bias
    slab = slab.at[off_wd:off_wd + H, 0:A].set(w_dense.T.astype(jnp.float32))    # W_dense^T (lane-padded)
    slab = slab.at[off_bd, 0:A].set(b_dense.astype(jnp.float32))                 # b_dense (lane-padded)

    layout = dict(S=S, H=H, A=A, C=C, R=R,
                  off_whh=off_whh, off_b=off_b, off_wd=off_wd, off_bd=off_bd)
    return slab, layout


def _make_lstm_dense_kernel(T, TB, layout):
    S, H = layout["S"], layout["H"]
    off_whh, off_b = layout["off_whh"], layout["off_b"]
    off_wd, off_bd = layout["off_wd"], layout["off_bd"]

    def kernel(x_ref, p_ref, out_ref):
        # Parameter slab is VMEM-resident across the whole batch grid (constant index_map).
        w_ih_t = p_ref[0:S, :]                     # (S, C)   zero-padded beyond 4H lanes
        w_hh_t = p_ref[off_whh:off_whh + H, :]     # (H, C)
        b = p_ref[off_b:off_b + 1, :]              # (1, C)   b_ih + b_hh
        w_d = p_ref[off_wd:off_wd + H, :]          # (H, C)   zero-padded beyond A lanes
        b_d = p_ref[off_bd:off_bd + 1, :]          # (1, C)

        h = jnp.zeros((TB, H), jnp.float32)
        c = jnp.zeros((TB, H), jnp.float32)

        # LSTM recurrence (serial in t by construction); T is small & static -> unrolled.
        for t in range(T):
            g = (jnp.dot(x_ref[t], w_ih_t, preferred_element_type=jnp.float32)
                 + jnp.dot(h, w_hh_t, preferred_element_type=jnp.float32)
                 + b)                              # (TB, C), gates packed in first 4H lanes
            i_g = _sigmoid(g[:, 0 * H:1 * H])
            f_g = _sigmoid(g[:, 1 * H:2 * H])
            g_g = jnp.tanh(g[:, 2 * H:3 * H])
            o_g = _sigmoid(g[:, 3 * H:4 * H])
            c = f_g * c + i_g * g_g
            h = o_g * jnp.tanh(c)

        hr = jnp.maximum(h, 0.0)                   # F.relu(lstm_out[-1])
        # Lane-dense (TB, C) store; wrapper slices to num_actions.
        out_ref[...] = jnp.dot(hr, w_d, preferred_element_type=jnp.float32) + b_d

    return kernel


def simple_finance_net_forward(x, param_slab, layout, *, batch_tile=256):
    """x: (seq, batch, num_states) f32 -> (batch, num_actions) f32."""
    x = x.astype(jnp.float32)
    T, B, S = x.shape
    assert S == layout["S"]
    A, C, R = layout["A"], layout["C"], layout["R"]

    # Sublane-full batch: pad to a multiple of 8 (padded rows are sliced off at the end).
    B_pad = max(_round_up(B, 8), 8)
    if B_pad != B:
        x = jnp.pad(x, ((0, 0), (0, B_pad - B), (0, 0)))

    TB = B_pad if B_pad <= batch_tile else batch_tile
    grid = (pl.cdiv(B_pad, TB),)
    kernel = _make_lstm_dense_kernel(T, TB, layout)

    out_padded = pl.pallas_call(
        kernel,
        out_shape=jax.ShapeDtypeStruct((B_pad, C), jnp.float32),
        grid_spec=pltpu.PrefetchScalarGridSpec(
            num_scalar_prefetch=0,
            grid=grid,
            in_specs=[
                pl.BlockSpec((T, TB, S), lambda i: (0, i, 0)),   # x: pipelined over batch
                pl.BlockSpec((R, C), lambda i: (0, 0)),          # params: VMEM-resident
            ],
            out_specs=pl.BlockSpec((TB, C), lambda i: (i, 0)),
        ),
        compiler_params=pltpu.CompilerParams(
            dimension_semantics=("parallel",),                   # shard batch across TCs (v7x)
        ),
    )(x, param_slab)

    return out_padded[:B, :A]


# ----------------------------- reference & test -----------------------------

def init_lstm_params(key, num_states, hidden):
    """PyTorch nn.LSTM default init: U(-1/sqrt(H), 1/sqrt(H)); gate order i,f,g,o."""
    k1, k2, k3, k4 = jax.random.split(key, 4)
    bound = 1.0 / (hidden ** 0.5)
    w_ih = jax.random.uniform(k1, (4 * hidden, num_states), jnp.float32, -bound, bound)
    w_hh = jax.random.uniform(k2, (4 * hidden, hidden), jnp.float32, -bound, bound)
    b_ih = jax.random.uniform(k3, (4 * hidden,), jnp.float32, -bound, bound)
    b_hh = jax.random.uniform(k4, (4 * hidden,), jnp.float32, -bound, bound)
    return w_ih, w_hh, b_ih, b_hh


def init_linear(key, fan_in, fan_out):
    """PyTorch nn.Linear default init; weight stored (out, in) like PyTorch."""
    kw, kb = jax.random.split(key)
    bound = 1.0 / (fan_in ** 0.5)
    w = jax.random.uniform(kw, (fan_out, fan_in), jnp.float32, -bound, bound)
    b = jax.random.uniform(kb, (fan_out,), jnp.float32, -bound, bound)
    return w, b


def reference_forward(x, w_ih, w_hh, b_ih, b_hh, w_dense, b_dense):
    T, B, S = x.shape
    H = w_hh.shape[1]
    h = jnp.zeros((B, H), jnp.float32)
    c = jnp.zeros((B, H), jnp.float32)
    for t in range(T):
        g = x[t] @ w_ih.T + h @ w_hh.T + b_ih + b_hh
        i_g = _sigmoid(g[:, 0:H])
        f_g = _sigmoid(g[:, H:2 * H])
        g_g = jnp.tanh(g[:, 2 * H:3 * H])
        o_g = _sigmoid(g[:, 3 * H:4 * H])
        c = f_g * c + i_g * g_g
        h = o_g * jnp.tanh(c)
    hr = jnp.maximum(h, 0.0)
    return hr @ w_dense.T + b_dense


if __name__ == "__main__":
    seq_len = 8
    batch = 2
    num_states = 16
    num_actions = 4
    hidden = 32          # fixed by the module: nn.LSTM(num_states, 32), nn.Linear(32, num_actions)

    key = jax.random.PRNGKey(0)
    kx, klstm, kdense = jax.random.split(key, 3)

    # PyTorch LSTM default (batch_first=False): x is (seq, batch, num_states)
    x = jax.random.normal(kx, (seq_len, batch, num_states), jnp.float32)

    w_ih, w_hh, b_ih, b_hh = init_lstm_params(klstm, num_states, hidden)
    w_dense, b_dense = init_linear(kdense, hidden, num_actions)

    slab, layout = pack_params(w_ih, w_hh, b_ih, b_hh, w_dense, b_dense)

    out = simple_finance_net_forward(x, slab, layout)
    out = jax.block_until_ready(out)

    ref = reference_forward(x, w_ih, w_hh, b_ih, b_hh, w_dense, b_dense)
    assert out.shape == (batch, num_actions), out.shape
    assert jnp.allclose(out, ref, atol=1e-4, rtol=1e-4), (out, ref)

    print("KERNEL_OK")
</pallas_src>

<mosaic_0001>
module attributes {stable_mosaic.version = 11 : i64} {
  func.func @kernel(%arg0: i32, %arg1: memref<8x8x16xf32, #tpu.memory_space<vmem>>, %arg2: memref<96x128xf32, #tpu.memory_space<vmem>>, %arg3: memref<8x128xf32, #tpu.memory_space<vmem>>) attributes {dimension_semantics = [#tpu.dimension_semantics<parallel>], iteration_bounds = array<i64: 1>, scalar_prefetch = 0 : i64, scratch_operands = 0 : i64, tpu.core_type = #tpu.core_type<tc>, window_params = [{transform_indices = @transform_0, window_bounds = array<i64: 8, 8, 16>}, {pipeline_mode = #tpu.pipeline_mode<synchronous>, transform_indices = @transform_1, window_bounds = array<i64: 96, 128>}, {transform_indices = @transform_2, window_bounds = array<i64: 8, 128>}]} {
    %c0 = arith.constant 0 : index
    %c0_0 = arith.constant 0 : index
    %0 = vector.load %arg2[%c0, %c0_0] : memref<96x128xf32, #tpu.memory_space<vmem>>, vector<16x128xf32>
    %c16 = arith.constant 16 : index
    %c0_1 = arith.constant 0 : index
    %1 = vector.load %arg2[%c16, %c0_1] : memref<96x128xf32, #tpu.memory_space<vmem>>, vector<32x128xf32>
    %c48 = arith.constant 48 : index
    %c0_2 = arith.constant 0 : index
    %2 = vector.load %arg2[%c48, %c0_2] : memref<96x128xf32, #tpu.memory_space<vmem>>, vector<1x128xf32>
    %c56 = arith.constant 56 : index
    %c0_3 = arith.constant 0 : index
    %3 = vector.load %arg2[%c56, %c0_3] : memref<96x128xf32, #tpu.memory_space<vmem>>, vector<32x128xf32>
    %c88 = arith.constant 88 : index
    %c0_4 = arith.constant 0 : index
    %4 = vector.load %arg2[%c88, %c0_4] : memref<96x128xf32, #tpu.memory_space<vmem>>, vector<1x128xf32>
    %cst = arith.constant 0.000000e+00 : f32
    %5 = vector.broadcast %cst : f32 to vector<8x32xf32>
    %cst_5 = arith.constant 0.000000e+00 : f32
    %6 = vector.broadcast %cst_5 : f32 to vector<8x32xf32>
    %c0_6 = arith.constant 0 : index
    %c0_7 = arith.constant 0 : index
    %c0_8 = arith.constant 0 : index
    %7 = vector.load %arg1[%c0_6, %c0_7, %c0_8] : memref<8x8x16xf32, #tpu.memory_space<vmem>>, vector<1x8x16xf32>
    %8 = vector.shape_cast %7 : vector<1x8x16xf32> to vector<8x16xf32>
    %cst_9 = arith.constant dense<0.000000e+00> : vector<8x128xf32>
    %9 = tpu.matmul %8, %0, %cst_9 {dimension_numbers = #tpu.dot_dimension_numbers<[1], [0], [0], [1], [0, 0, 1, 1], [], []>} : vector<8x16xf32>, vector<16x128xf32>, vector<8x128xf32> -> vector<8x128xf32>
    %cst_10 = arith.constant dense<0.000000e+00> : vector<8x128xf32>
    %10 = tpu.matmul %5, %1, %cst_10 {dimension_numbers = #tpu.dot_dimension_numbers<[1], [0], [0], [1], [0, 0, 1, 1], [], []>} : vector<8x32xf32>, vector<32x128xf32>, vector<8x128xf32> -> vector<8x128xf32>
    %11 = arith.addf %9, %10 : vector<8x128xf32>
    %12 = vector.broadcast %2 : vector<1x128xf32> to vector<8x128xf32>
    %13 = arith.addf %11, %12 : vector<8x128xf32>
    %14 = vector.extract_strided_slice %13 {offsets = [0, 0], sizes = [8, 32], strides = [1, 1]} : vector<8x128xf32> to vector<8x32xf32>
    %cst_11 = arith.constant 0.000000e+00 : f32
    %15 = vector.broadcast %cst_11 : f32 to vector<8x32xf32>
    %16 = arith.subf %15, %14 : vector<8x32xf32>
    %17 = math.exp %16 : vector<8x32xf32>
    %cst_12 = arith.constant 1.000000e+00 : f32
    %18 = vector.broadcast %cst_12 : f32 to vector<8x32xf32>
    %19 = arith.addf %18, %17 : vector<8x32xf32>
    %cst_13 = arith.constant 1.000000e+00 : f32
    %20 = vector.broadcast %cst_13 : f32 to vector<8x32xf32>
    %21 = arith.divf %20, %19 : vector<8x32xf32>
    %22 = vector.extract_strided_slice %13 {offsets = [0, 32], sizes = [8, 32], strides = [1, 1]} : vector<8x128xf32> to vector<8x32xf32>
    %cst_14 = arith.constant 0.000000e+00 : f32
    %23 = vector.broadcast %cst_14 : f32 to vector<8x32xf32>
    %24 = arith.subf %23, %22 : vector<8x32xf32>
    %25 = math.exp %24 : vector<8x32xf32>
    %cst_15 = arith.constant 1.000000e+00 : f32
    %26 = vector.broadcast %cst_15 : f32 to vector<8x32xf32>
    %27 = arith.addf %26, %25 : vector<8x32xf32>
    %cst_16 = arith.constant 1.000000e+00 : f32
    %28 = vector.broadcast %cst_16 : f32 to vector<8x32xf32>
    %29 = arith.divf %28, %27 : vector<8x32xf32>
    %30 = vector.extract_strided_slice %13 {offsets = [0, 64], sizes = [8, 32], strides = [1, 1]} : vector<8x128xf32> to vector<8x32xf32>
    %31 = math.tanh %30 : vector<8x32xf32>
    %32 = vector.extract_strided_slice %13 {offsets = [0, 96], sizes = [8, 32], strides = [1, 1]} : vector<8x128xf32> to vector<8x32xf32>
    %cst_17 = arith.constant 0.000000e+00 : f32
    %33 = vector.broadcast %cst_17 : f32 to vector<8x32xf32>
    %34 = arith.subf %33, %32 : vector<8x32xf32>
    %35 = math.exp %34 : vector<8x32xf32>
    %cst_18 = arith.constant 1.000000e+00 : f32
    %36 = vector.broadcast %cst_18 : f32 to vector<8x32xf32>
    %37 = arith.addf %36, %35 : vector<8x32xf32>
    %cst_19 = arith.constant 1.000000e+00 : f32
    %38 = vector.broadcast %cst_19 : f32 to vector<8x32xf32>
    %39 = arith.divf %38, %37 : vector<8x32xf32>
    %40 = arith.mulf %29, %6 : vector<8x32xf32>
    %41 = arith.mulf %21, %31 : vector<8x32xf32>
    %42 = arith.addf %40, %41 : vector<8x32xf32>
    %43 = math.tanh %42 : vector<8x32xf32>
    %44 = arith.mulf %39, %43 : vector<8x32xf32>
    %c1 = arith.constant 1 : index
    %c0_20 = arith.constant 0 : index
    %c0_21 = arith.constant 0 : index
    %45 = vector.load %arg1[%c1, %c0_20, %c0_21] : memref<8x8x16xf32, #tpu.memory_space<vmem>>, vector<1x8x16xf32>
    %46 = vector.shape_cast %45 : vector<1x8x16xf32> to vector<8x16xf32>
    %cst_22 = arith.constant dense<0.000000e+00> : vector<8x128xf32>
    %47 = tpu.matmul %46, %0, %cst_22 {dimension_numbers = #tpu.dot_dimension_numbers<[1], [0], [0], [1], [0, 0, 1, 1], [], []>} : vector<8x16xf32>, vector<16x128xf32>, vector<8x128xf32> -> vector<8x128xf32>
    %cst_23 = arith.constant dense<0.000000e+00> : vector<8x128xf32>
    %48 = tpu.matmul %44, %1, %cst_23 {dimension_numbers = #tpu.dot_dimension_numbers<[1], [0], [0], [1], [0, 0, 1, 1], [], []>} : vector<8x32xf32>, vector<32x128xf32>, vector<8x128xf32> -> vector<8x128xf32>
    %49 = arith.addf %47, %48 : vector<8x128xf32>
    %50 = vector.broadcast %2 : vector<1x128xf32> to vector<8x128xf32>
    %51 = arith.addf %49, %50 : vector<8x128xf32>
    %52 = vector.extract_strided_slice %51 {offsets = [0, 0], sizes = [8, 32], strides = [1, 1]} : vector<8x128xf32> to vector<8x32xf32>
    %cst_24 = arith.constant 0.000000e+00 : f32
    %53 = vector.broadcast %cst_24 : f32 to vector<8x32xf32>
    %54 = arith.subf %53, %52 : vector<8x32xf32>
    %55 = math.exp %54 : vector<8x32xf32>
    %cst_25 = arith.constant 1.000000e+00 : f32
    %56 = vector.broadcast %cst_25 : f32 to vector<8x32xf32>
    %57 = arith.addf %56, %55 : vector<8x32xf32>
    %cst_26 = arith.constant 1.000000e+00 : f32
    %58 = vector.broadcast %cst_26 : f32 to vector<8x32xf32>
    %59 = arith.divf %58, %57 : vector<8x32xf32>
    %60 = vector.extract_strided_slice %51 {offsets = [0, 32], sizes = [8, 32], strides = [1, 1]} : vector<8x128xf32> to vector<8x32xf32>
    %cst_27 = arith.constant 0.000000e+00 : f32
    %61 = vector.broadcast %cst_27 : f32 to vector<8x32xf32>
    %62 = arith.subf %61, %60 : vector<8x32xf32>
    %63 = math.exp %62 : vector<8x32xf32>
    %cst_28 = arith.constant 1.000000e+00 : f32
    %64 = vector.broadcast %cst_28 : f32 to vector<8x32xf32>
    %65 = arith.addf %64, %63 : vector<8x32xf32>
    %cst_29 = arith.constant 1.000000e+00 : f32
    %66 = vector.broadcast %cst_29 : f32 to vector<8x32xf32>
    %67 = arith.divf %66, %65 : vector<8x32xf32>
    %68 = vector.extract_strided_slice %51 {offsets = [0, 64], sizes = [8, 32], strides = [1, 1]} : vector<8x128xf32> to vector<8x32xf32>
    %69 = math.tanh %68 : vector<8x32xf32>
    %70 = vector.extract_strided_slice %51 {offsets = [0, 96], sizes = [8, 32], strides = [1, 1]} : vector<8x128xf32> to vector<8x32xf32>
    %cst_30 = arith.constant 0.000000e+00 : f32
    %71 = vector.broadcast %cst_30 : f32 to vector<8x32xf32>
    %72 = arith.subf %71, %70 : vector<8x32xf32>
    %73 = math.exp %72 : vector<8x32xf32>
    %cst_31 = arith.constant 1.000000e+00 : f32
    %74 = vector.broadcast %cst_31 : f32 to vector<8x32xf32>
    %75 = arith.addf %74, %73 : vector<8x32xf32>
    %cst_32 = arith.constant 1.000000e+00 : f32
    %76 = vector.broadcast %cst_32 : f32 to vector<8x32xf32>
    %77 = arith.divf %76, %75 : vector<8x32xf32>
    %78 = arith.mulf %67, %42 : vector<8x32xf32>
    %79 = arith.mulf %59, %69 : vector<8x32xf32>
    %80 = arith.addf %78, %79 : vector<8x32xf32>
    %81 = math.tanh %80 : vector<8x32xf32>
    %82 = arith.mulf %77, %81 : vector<8x32xf32>
    %c2 = arith.constant 2 : index
    %c0_33 = arith.constant 0 : index
    %c0_34 = arith.constant 0 : index
    %83 = vector.load %arg1[%c2, %c0_33, %c0_34] : memref<8x8x16xf32, #tpu.memory_space<vmem>>, vector<1x8x16xf32>
    %84 = vector.shape_cast %83 : vector<1x8x16xf32> to vector<8x16xf32>
    %cst_35 = arith.constant dense<0.000000e+00> : vector<8x128xf32>
    %85 = tpu.matmul %84, %0, %cst_35 {dimension_numbers = #tpu.dot_dimension_numbers<[1], [0], [0], [1], [0, 0, 1, 1], [], []>} : vector<8x16xf32>, vector<16x128xf32>, vector<8x128xf32> -> vector<8x128xf32>
    %cst_36 = arith.constant dense<0.000000e+00> : vector<8x128xf32>
    %86 = tpu.matmul %82, %1, %cst_36 {dimension_numbers = #tpu.dot_dimension_numbers<[1], [0], [0], [1], [0, 0, 1, 1], [], []>} : vector<8x32xf32>, vector<32x128xf32>, vector<8x128xf32> -> vector<8x128xf32>
    %87 = arith.addf %85, %86 : vector<8x128xf32>
    %88 = vector.broadcast %2 : vector<1x128xf32> to vector<8x128xf32>
    %89 = arith.addf %87, %88 : vector<8x128xf32>
    %90 = vector.extract_strided_slice %89 {offsets = [0, 0], sizes = [8, 32], strides = [1, 1]} : vector<8x128xf32> to vector<8x32xf32>
    %cst_37 = arith.constant 0.000000e+00 : f32
    %91 = vector.broadcast %cst_37 : f32 to vector<8x32xf32>
    %92 = arith.subf %91, %90 : vector<8x32xf32>
    %93 = math.exp %92 : vector<8x32xf32>
    %cst_38 = arith.constant 1.000000e+00 : f32
    %94 = vector.broadcast %cst_38 : f32 to vector<8x32xf32>
    %95 = arith.addf %94, %93 : vector<8x32xf32>
    %cst_39 = arith.constant 1.000000e+00 : f32
    %96 = vector.broadcast %cst_39 : f32 to vector<8x32xf32>
    %97 = arith.divf %96, %95 : vector<8x32xf32>
    %98 = vector.extract_strided_slice %89 {offsets = [0, 32], sizes = [8, 32], strides = [1, 1]} : vector<8x128xf32> to vector<8x32xf32>
    %cst_40 = arith.constant 0.000000e+00 : f32
    %99 = vector.broadcast %cst_40 : f32 to vector<8x32xf32>
    %100 = arith.subf %99, %98 : vector<8x32xf32>
    %101 = math.exp %100 : vector<8x32xf32>
    %cst_41 = arith.constant 1.000000e+00 : f32
    %102 = vector.broadcast %cst_41 : f32 to vector<8x32xf32>
    %103 = arith.addf %102, %101 : vector<8x32xf32>
    %cst_42 = arith.constant 1.000000e+00 : f32
    %104 = vector.broadcast %cst_42 : f32 to vector<8x32xf32>
    %105 = arith.divf %104, %103 : vector<8x32xf32>
    %106 = vector.extract_strided_slice %89 {offsets = [0, 64], sizes = [8, 32], strides = [1, 1]} : vector<8x128xf32> to vector<8x32xf32>
    %107 = math.tanh %106 : vector<8x32xf32>
    %108 = vector.extract_strided_slice %89 {offsets = [0, 96], sizes = [8, 32], strides = [1, 1]} : vector<8x128xf32> to vector<8x32xf32>
    %cst_43 = arith.constant 0.000000e+00 : f32
    %109 = vector.broadcast %cst_43 : f32 to vector<8x32xf32>
    %110 = arith.subf %109, %108 : vector<8x32xf32>
    %111 = math.exp %110 : vector<8x32xf32>
    %cst_44 = arith.constant 1.000000e+00 : f32
    %112 = vector.broadcast %cst_44 : f32 to vector<8x32xf32>
    %113 = arith.addf %112, %111 : vector<8x32xf32>
    %cst_45 = arith.constant 1.000000e+00 : f32
    %114 = vector.broadcast %cst_45 : f32 to vector<8x32xf32>
    %115 = arith.divf %114, %113 : vector<8x32xf32>
    %116 = arith.mulf %105, %80 : vector<8x32xf32>
    %117 = arith.mulf %97, %107 : vector<8x32xf32>
    %118 = arith.addf %116, %117 : vector<8x32xf32>
    %119 = math.tanh %118 : vector<8x32xf32>
    %120 = arith.mulf %115, %119 : vector<8x32xf32>
    %c3 = arith.constant 3 : index
    %c0_46 = arith.constant 0 : index
    %c0_47 = arith.constant 0 : index
    %121 = vector.load %arg1[%c3, %c0_46, %c0_47] : memref<8x8x16xf32, #tpu.memory_space<vmem>>, vector<1x8x16xf32>
    %122 = vector.shape_cast %121 : vector<1x8x16xf32> to vector<8x16xf32>
    %cst_48 = arith.constant dense<0.000000e+00> : vector<8x128xf32>
    %123 = tpu.matmul %122, %0, %cst_48 {dimension_numbers = #tpu.dot_dimension_numbers<[1], [0], [0], [1], [0, 0, 1, 1], [], []>} : vector<8x16xf32>, vector<16x128xf32>, vector<8x128xf32> -> vector<8x128xf32>
    %cst_49 = arith.constant dense<0.000000e+00> : vector<8x128xf32>
    %124 = tpu.matmul %120, %1, %cst_49 {dimension_numbers = #tpu.dot_dimension_numbers<[1], [0], [0], [1], [0, 0, 1, 1], [], []>} : vector<8x32xf32>, vector<32x128xf32>, vector<8x128xf32> -> vector<8x128xf32>
    %125 = arith.addf %123, %124 : vector<8x128xf32>
    %126 = vector.broadcast %2 : vector<1x128xf32> to vector<8x128xf32>
    %127 = arith.addf %125, %126 : vector<8x128xf32>
    %128 = vector.extract_strided_slice %127 {offsets = [0, 0], sizes = [8, 32], strides = [1, 1]} : vector<8x128xf32> to vector<8x32xf32>
    %cst_50 = arith.constant 0.000000e+00 : f32
    %129 = vector.broadcast %cst_50 : f32 to vector<8x32xf32>
    %130 = arith.subf %129, %128 : vector<8x32xf32>
    %131 = math.exp %130 : vector<8x32xf32>
    %cst_51 = arith.constant 1.000000e+00 : f32
    %132 = vector.broadcast %cst_51 : f32 to vector<8x32xf32>
    %133 = arith.addf %132, %131 : vector<8x32xf32>
    %cst_52 = arith.constant 1.000000e+00 : f32
    %134 = vector.broadcast %cst_52 : f32 to vector<8x32xf32>
    %135 = arith.divf %134, %133 : vector<8x32xf32>
    %136 = vector.extract_strided_slice %127 {offsets = [0, 32], sizes = [8, 32], strides = [1, 1]} : vector<8x128xf32> to vector<8x32xf32>
    %cst_53 = arith.constant 0.000000e+00 : f32
    %137 = vector.broadcast %cst_53 : f32 to vector<8x32xf32>
    %138 = arith.subf %137, %136 : vector<8x32xf32>
    %139 = math.exp %138 : vector<8x32xf32>
    %cst_54 = arith.constant 1.000000e+00 : f32
    %140 = vector.broadcast %cst_54 : f32 to vector<8x32xf32>
    %141 = arith.addf %140, %139 : vector<8x32xf32>
    %cst_55 = arith.constant 1.000000e+00 : f32
    %142 = vector.broadcast %cst_55 : f32 to vector<8x32xf32>
    %143 = arith.divf %142, %141 : vector<8x32xf32>
    %144 = vector.extract_strided_slice %127 {offsets = [0, 64], sizes = [8, 32], strides = [1, 1]} : vector<8x128xf32> to vector<8x32xf32>
    %145 = math.tanh %144 : vector<8x32xf32>
    %146 = vector.extract_strided_slice %127 {offsets = [0, 96], sizes = [8, 32], strides = [1, 1]} : vector<8x128xf32> to vector<8x32xf32>
    %cst_56 = arith.constant 0.000000e+00 : f32
    %147 = vector.broadcast %cst_56 : f32 to vector<8x32xf32>
    %148 = arith.subf %147, %146 : vector<8x32xf32>
    %149 = math.exp %148 : vector<8x32xf32>
    %cst_57 = arith.constant 1.000000e+00 : f32
    %150 = vector.broadcast %cst_57 : f32 to vector<8x32xf32>
    %151 = arith.addf %150, %149 : vector<8x32xf32>
    %cst_58 = arith.constant 1.000000e+00 : f32
    %152 = vector.broadcast %cst_58 : f32 to vector<8x32xf32>
    %153 = arith.divf %152, %151 : vector<8x32xf32>
    %154 = arith.mulf %143, %118 : vector<8x32xf32>
    %155 = arith.mulf %135, %145 : vector<8x32xf32>
    %156 = arith.addf %154, %155 : vector<8x32xf32>
    %157 = math.tanh %156 : vector<8x32xf32>
    %158 = arith.mulf %153, %157 : vector<8x32xf32>
    %c4 = arith.constant 4 : index
    %c0_59 = arith.constant 0 : index
    %c0_60 = arith.constant 0 : index
    %159 = vector.load %arg1[%c4, %c0_59, %c0_60] : memref<8x8x16xf32, #tpu.memory_space<vmem>>, vector<1x8x16xf32>
    %160 = vector.shape_cast %159 : vector<1x8x16xf32> to vector<8x16xf32>
    %cst_61 = arith.constant dense<0.000000e+00> : vector<8x128xf32>
    %161 = tpu.matmul %160, %0, %cst_61 {dimension_numbers = #tpu.dot_dimension_numbers<[1], [0], [0], [1], [0, 0, 1, 1], [], []>} : vector<8x16xf32>, vector<16x128xf32>, vector<8x128xf32> -> vector<8x128xf32>
    %cst_62 = arith.constant dense<0.000000e+00> : vector<8x128xf32>
    %162 = tpu.matmul %158, %1, %cst_62 {dimension_numbers = #tpu.dot_dimension_numbers<[1], [0], [0], [1], [0, 0, 1, 1], [], []>} : vector<8x32xf32>, vector<32x128xf32>, vector<8x128xf32> -> vector<8x128xf32>
    %163 = arith.addf %161, %162 : vector<8x128xf32>
    %164 = vector.broadcast %2 : vector<1x128xf32> to vector<8x128xf32>
    %165 = arith.addf %163, %164 : vector<8x128xf32>
    %166 = vector.extract_strided_slice %165 {offsets = [0, 0], sizes = [8, 32], strides = [1, 1]} : vector<8x128xf32> to vector<8x32xf32>
    %cst_63 = arith.constant 0.000000e+00 : f32
    %167 = vector.broadcast %cst_63 : f32 to vector<8x32xf32>
    %168 = arith.subf %167, %166 : vector<8x32xf32>
    %169 = math.exp %168 : vector<8x32xf32>
    %cst_64 = arith.constant 1.000000e+00 : f32
    %170 = vector.broadcast %cst_64 : f32 to vector<8x32xf32>
    %171 = arith.addf %170, %169 : vector<8x32xf32>
    %cst_65 = arith.constant 1.000000e+00 : f32
    %172 = vector.broadcast %cst_65 : f32 to vector<8x32xf32>
    %173 = arith.divf %172, %171 : vector<8x32xf32>
    %174 = vector.extract_strided_slice %165 {offsets = [0, 32], sizes = [8, 32], strides = [1, 1]} : vector<8x128xf32> to vector<8x32xf32>
    %cst_66 = arith.constant 0.000000e+00 : f32
    %175 = vector.broadcast %cst_66 : f32 to vector<8x32xf32>
    %176 = arith.subf %175, %174 : vector<8x32xf32>
    %177 = math.exp %176 : vector<8x32xf32>
    %cst_67 = arith.constant 1.000000e+00 : f32
    %178 = vector.broadcast %cst_67 : f32 to vector<8x32xf32>
    %179 = arith.addf %178, %177 : vector<8x32xf32>
    %cst_68 = arith.constant 1.000000e+00 : f32
    %180 = vector.broadcast %cst_68 : f32 to vector<8x32xf32>
    %181 = arith.divf %180, %179 : vector<8x32xf32>
    %182 = vector.extract_strided_slice %165 {offsets = [0, 64], sizes = [8, 32], strides = [1, 1]} : vector<8x128xf32> to vector<8x32xf32>
    %183 = math.tanh %182 : vector<8x32xf32>
    %184 = vector.extract_strided_slice %165 {offsets = [0, 96], sizes = [8, 32], strides = [1, 1]} : vector<8x128xf32> to vector<8x32xf32>
    %cst_69 = arith.constant 0.000000e+00 : f32
    %185 = vector.broadcast %cst_69 : f32 to vector<8x32xf32>
    %186 = arith.subf %185, %184 : vector<8x32xf32>
    %187 = math.exp %186 : vector<8x32xf32>
    %cst_70 = arith.constant 1.000000e+00 : f32
    %188 = vector.broadcast %cst_70 : f32 to vector<8x32xf32>
    %189 = arith.addf %188, %187 : vector<8x32xf32>
    %cst_71 = arith.constant 1.000000e+00 : f32
    %190 = vector.broadcast %cst_71 : f32 to vector<8x32xf32>
    %191 = arith.divf %190, %189 : vector<8x32xf32>
    %192 = arith.mulf %181, %156 : vector<8x32xf32>
    %193 = arith.mulf %173, %183 : vector<8x32xf32>
    %194 = arith.addf %192, %193 : vector<8x32xf32>
    %195 = math.tanh %194 : vector<8x32xf32>
    %196 = arith.mulf %191, %195 : vector<8x32xf32>
    %c5 = arith.constant 5 : index
    %c0_72 = arith.constant 0 : index
    %c0_73 = arith.constant 0 : index
    %197 = vector.load %arg1[%c5, %c0_72, %c0_73] : memref<8x8x16xf32, #tpu.memory_space<vmem>>, vector<1x8x16xf32>
    %198 = vector.shape_cast %197 : vector<1x8x16xf32> to vector<8x16xf32>
    %cst_74 = arith.constant dense<0.000000e+00> : vector<8x128xf32>
    %199 = tpu.matmul %198, %0, %cst_74 {dimension_numbers = #tpu.dot_dimension_numbers<[1], [0], [0], [1], [0, 0, 1, 1], [], []>} : vector<8x16xf32>, vector<16x128xf32>, vector<8x128xf32> -> vector<8x128xf32>
    %cst_75 = arith.constant dense<0.000000e+00> : vector<8x128xf32>
    %200 = tpu.matmul %196, %1, %cst_75 {dimension_numbers = #tpu.dot_dimension_numbers<[1], [0], [0], [1], [0, 0, 1, 1], [], []>} : vector<8x32xf32>, vector<32x128xf32>, vector<8x128xf32> -> vector<8x128xf32>
    %201 = arith.addf %199, %200 : vector<8x128xf32>
    %202 = vector.broadcast %2 : vector<1x128xf32> to vector<8x128xf32>
    %203 = arith.addf %201, %202 : vector<8x128xf32>
    %204 = vector.extract_strided_slice %203 {offsets = [0, 0], sizes = [8, 32], strides = [1, 1]} : vector<8x128xf32> to vector<8x32xf32>
    %cst_76 = arith.constant 0.000000e+00 : f32
    %205 = vector.broadcast %cst_76 : f32 to vector<8x32xf32>
    %206 = arith.subf %205, %204 : vector<8x32xf32>
    %207 = math.exp %206 : vector<8x32xf32>
    %cst_77 = arith.constant 1.000000e+00 : f32
    %208 = vector.broadcast %cst_77 : f32 to vector<8x32xf32>
    %209 = arith.addf %208, %207 : vector<8x32xf32>
    %cst_78 = arith.constant 1.000000e+00 : f32
    %210 = vector.broadcast %cst_78 : f32 to vector<8x32xf32>
    %211 = arith.divf %210, %209 : vector<8x32xf32>
    %212 = vector.extract_strided_slice %203 {offsets = [0, 32], sizes = [8, 32], strides = [1, 1]} : vector<8x128xf32> to vector<8x32xf32>
    %cst_79 = arith.constant 0.000000e+00 : f32
    %213 = vector.broadcast %cst_79 : f32 to vector<8x32xf32>
    %214 = arith.subf %213, %212 : vector<8x32xf32>
    %215 = math.exp %214 : vector<8x32xf32>
    %cst_80 = arith.constant 1.000000e+00 : f32
    %216 = vector.broadcast %cst_80 : f32 to vector<8x32xf32>
    %217 = arith.addf %216, %215 : vector<8x32xf32>
    %cst_81 = arith.constant 1.000000e+00 : f32
    %218 = vector.broadcast %cst_81 : f32 to vector<8x32xf32>
    %219 = arith.divf %218, %217 : vector<8x32xf32>
    %220 = vector.extract_strided_slice %203 {offsets = [0, 64], sizes = [8, 32], strides = [1, 1]} : vector<8x128xf32> to vector<8x32xf32>
    %221 = math.tanh %220 : vector<8x32xf32>
    %222 = vector.extract_strided_slice %203 {offsets = [0, 96], sizes = [8, 32], strides = [1, 1]} : vector<8x128xf32> to vector<8x32xf32>
    %cst_82 = arith.constant 0.000000e+00 : f32
    %223 = vector.broadcast %cst_82 : f32 to vector<8x32xf32>
    %224 = arith.subf %223, %222 : vector<8x32xf32>
    %225 = math.exp %224 : vector<8x32xf32>
    %cst_83 = arith.constant 1.000000e+00 : f32
    %226 = vector.broadcast %cst_83 : f32 to vector<8x32xf32>
    %227 = arith.addf %226, %225 : vector<8x32xf32>
    %cst_84 = arith.constant 1.000000e+00 : f32
    %228 = vector.broadcast %cst_84 : f32 to vector<8x32xf32>
    %229 = arith.divf %228, %227 : vector<8x32xf32>
    %230 = arith.mulf %219, %194 : vector<8x32xf32>
    %231 = arith.mulf %211, %221 : vector<8x32xf32>
    %232 = arith.addf %230, %231 : vector<8x32xf32>
    %233 = math.tanh %232 : vector<8x32xf32>
    %234 = arith.mulf %229, %233 : vector<8x32xf32>
    %c6 = arith.constant 6 : index
    %c0_85 = arith.constant 0 : index
    %c0_86 = arith.constant 0 : index
    %235 = vector.load %arg1[%c6, %c0_85, %c0_86] : memref<8x8x16xf32, #tpu.memory_space<vmem>>, vector<1x8x16xf32>
    %236 = vector.shape_cast %235 : vector<1x8x16xf32> to vector<8x16xf32>
    %cst_87 = arith.constant dense<0.000000e+00> : vector<8x128xf32>
    %237 = tpu.matmul %236, %0, %cst_87 {dimension_numbers = #tpu.dot_dimension_numbers<[1], [0], [0], [1], [0, 0, 1, 1], [], []>} : vector<8x16xf32>, vector<16x128xf32>, vector<8x128xf32> -> vector<8x128xf32>
    %cst_88 = arith.constant dense<0.000000e+00> : vector<8x128xf32>
    %238 = tpu.matmul %234, %1, %cst_88 {dimension_numbers = #tpu.dot_dimension_numbers<[1], [0], [0], [1], [0, 0, 1, 1], [], []>} : vector<8x32xf32>, vector<32x128xf32>, vector<8x128xf32> -> vector<8x128xf32>
    %239 = arith.addf %237, %238 : vector<8x128xf32>
    %240 = vector.broadcast %2 : vector<1x128xf32> to vector<8x128xf32>
    %241 = arith.addf %239, %240 : vector<8x128xf32>
    %242 = vector.extract_strided_slice %241 {offsets = [0, 0], sizes = [8, 32], strides = [1, 1]} : vector<8x128xf32> to vector<8x32xf32>
    %cst_89 = arith.constant 0.000000e+00 : f32
    %243 = vector.broadcast %cst_89 : f32 to vector<8x32xf32>
    %244 = arith.subf %243, %242 : vector<8x32xf32>
    %245 = math.exp %244 : vector<8x32xf32>
    %cst_90 = arith.constant 1.000000e+00 : f32
    %246 = vector.broadcast %cst_90 : f32 to vector<8x32xf32>
    %247 = arith.addf %246, %245 : vector<8x32xf32>
    %cst_91 = arith.constant 1.000000e+00 : f32
    %248 = vector.broadcast %cst_91 : f32 to vector<8x32xf32>
    %249 = arith.divf %248, %247 : vector<8x32xf32>
    %250 = vector.extract_strided_slice %241 {offsets = [0, 32], sizes = [8, 32], strides = [1, 1]} : vector<8x128xf32> to vector<8x32xf32>
    %cst_92 = arith.constant 0.000000e+00 : f32
    %251 = vector.broadcast %cst_92 : f32 to vector<8x32xf32>
    %252 = arith.subf %251, %250 : vector<8x32xf32>
    %253 = math.exp %252 : vector<8x32xf32>
    %cst_93 = arith.constant 1.000000e+00 : f32
    %254 = vector.broadcast %cst_93 : f32 to vector<8x32xf32>
    %255 = arith.addf %254, %253 : vector<8x32xf32>
    %cst_94 = arith.constant 1.000000e+00 : f32
    %256 = vector.broadcast %cst_94 : f32 to vector<8x32xf32>
    %257 = arith.divf %256, %255 : vector<8x32xf32>
    %258 = vector.extract_strided_slice %241 {offsets = [0, 64], sizes = [8, 32], strides = [1, 1]} : vector<8x128xf32> to vector<8x32xf32>
    %259 = math.tanh %258 : vector<8x32xf32>
    %260 = vector.extract_strided_slice %241 {offsets = [0, 96], sizes = [8, 32], strides = [1, 1]} : vector<8x128xf32> to vector<8x32xf32>
    %cst_95 = arith.constant 0.000000e+00 : f32
    %261 = vector.broadcast %cst_95 : f32 to vector<8x32xf32>
    %262 = arith.subf %261, %260 : vector<8x32xf32>
    %263 = math.exp %262 : vector<8x32xf32>
    %cst_96 = arith.constant 1.000000e+00 : f32
    %264 = vector.broadcast %cst_96 : f32 to vector<8x32xf32>
    %265 = arith.addf %264, %263 : vector<8x32xf32>
    %cst_97 = arith.constant 1.000000e+00 : f32
    %266 = vector.broadcast %cst_97 : f32 to vector<8x32xf32>
    %267 = arith.divf %266, %265 : vector<8x32xf32>
    %268 = arith.mulf %257, %232 : vector<8x32xf32>
    %269 = arith.mulf %249, %259 : vector<8x32xf32>
    %270 = arith.addf %268, %269 : vector<8x32xf32>
    %271 = math.tanh %270 : vector<8x32xf32>
    %272 = arith.mulf %267, %271 : vector<8x32xf32>
    %c7 = arith.constant 7 : index
    %c0_98 = arith.constant 0 : index
    %c0_99 = arith.constant 0 : index
    %273 = vector.load %arg1[%c7, %c0_98, %c0_99] : memref<8x8x16xf32, #tpu.memory_space<vmem>>, vector<1x8x16xf32>
    %274 = vector.shape_cast %273 : vector<1x8x16xf32> to vector<8x16xf32>
    %cst_100 = arith.constant dense<0.000000e+00> : vector<8x128xf32>
    %275 = tpu.matmul %274, %0, %cst_100 {dimension_numbers = #tpu.dot_dimension_numbers<[1], [0], [0], [1], [0, 0, 1, 1], [], []>} : vector<8x16xf32>, vector<16x128xf32>, vector<8x128xf32> -> vector<8x128xf32>
    %cst_101 = arith.constant dense<0.000000e+00> : vector<8x128xf32>
    %276 = tpu.matmul %272, %1, %cst_101 {dimension_numbers = #tpu.dot_dimension_numbers<[1], [0], [0], [1], [0, 0, 1, 1], [], []>} : vector<8x32xf32>, vector<32x128xf32>, vector<8x128xf32> -> vector<8x128xf32>
    %277 = arith.addf %275, %276 : vector<8x128xf32>
    %278 = vector.broadcast %2 : vector<1x128xf32> to vector<8x128xf32>
    %279 = arith.addf %277, %278 : vector<8x128xf32>
    %280 = vector.extract_strided_slice %279 {offsets = [0, 0], sizes = [8, 32], strides = [1, 1]} : vector<8x128xf32> to vector<8x32xf32>
    %cst_102 = arith.constant 0.000000e+00 : f32
    %281 = vector.broadcast %cst_102 : f32 to vector<8x32xf32>
    %282 = arith.subf %281, %280 : vector<8x32xf32>
    %283 = math.exp %282 : vector<8x32xf32>
    %cst_103 = arith.constant 1.000000e+00 : f32
    %284 = vector.broadcast %cst_103 : f32 to vector<8x32xf32>
    %285 = arith.addf %284, %283 : vector<8x32xf32>
    %cst_104 = arith.constant 1.000000e+00 : f32
    %286 = vector.broadcast %cst_104 : f32 to vector<8x32xf32>
    %287 = arith.divf %286, %285 : vector<8x32xf32>
    %288 = vector.extract_strided_slice %279 {offsets = [0, 32], sizes = [8, 32], strides = [1, 1]} : vector<8x128xf32> to vector<8x32xf32>
    %cst_105 = arith.constant 0.000000e+00 : f32
    %289 = vector.broadcast %cst_105 : f32 to vector<8x32xf32>
    %290 = arith.subf %289, %288 : vector<8x32xf32>
    %291 = math.exp %290 : vector<8x32xf32>
    %cst_106 = arith.constant 1.000000e+00 : f32
    %292 = vector.broadcast %cst_106 : f32 to vector<8x32xf32>
    %293 = arith.addf %292, %291 : vector<8x32xf32>
    %cst_107 = arith.constant 1.000000e+00 : f32
    %294 = vector.broadcast %cst_107 : f32 to vector<8x32xf32>
    %295 = arith.divf %294, %293 : vector<8x32xf32>
    %296 = vector.extract_strided_slice %279 {offsets = [0, 64], sizes = [8, 32], strides = [1, 1]} : vector<8x128xf32> to vector<8x32xf32>
    %297 = math.tanh %296 : vector<8x32xf32>
    %298 = vector.extract_strided_slice %279 {offsets = [0, 96], sizes = [8, 32], strides = [1, 1]} : vector<8x128xf32> to vector<8x32xf32>
    %cst_108 = arith.constant 0.000000e+00 : f32
    %299 = vector.broadcast %cst_108 : f32 to vector<8x32xf32>
    %300 = arith.subf %299, %298 : vector<8x32xf32>
    %301 = math.exp %300 : vector<8x32xf32>
    %cst_109 = arith.constant 1.000000e+00 : f32
    %302 = vector.broadcast %cst_109 : f32 to vector<8x32xf32>
    %303 = arith.addf %302, %301 : vector<8x32xf32>
    %cst_110 = arith.constant 1.000000e+00 : f32
    %304 = vector.broadcast %cst_110 : f32 to vector<8x32xf32>
    %305 = arith.divf %304, %303 : vector<8x32xf32>
    %306 = arith.mulf %295, %270 : vector<8x32xf32>
    %307 = arith.mulf %287, %297 : vector<8x32xf32>
    %308 = arith.addf %306, %307 : vector<8x32xf32>
    %309 = math.tanh %308 : vector<8x32xf32>
    %310 = arith.mulf %305, %309 : vector<8x32xf32>
    %cst_111 = arith.constant 0.000000e+00 : f32
    %311 = vector.broadcast %cst_111 : f32 to vector<8x32xf32>
    %312 = arith.maximumf %310, %311 : vector<8x32xf32>
    %cst_112 = arith.constant dense<0.000000e+00> : vector<8x128xf32>
    %313 = tpu.matmul %312, %3, %cst_112 {dimension_numbers = #tpu.dot_dimension_numbers<[1], [0], [0], [1], [0, 0, 1, 1], [], []>} : vector<8x32xf32>, vector<32x128xf32>, vector<8x128xf32> -> vector<8x128xf32>
    %314 = vector.broadcast %4 : vector<1x128xf32> to vector<8x128xf32>
    %315 = arith.addf %313, %314 : vector<8x128xf32>
    %c0_113 = arith.constant 0 : index
    %c0_114 = arith.constant 0 : index
    %316 = vector.load %arg3[%c0_113, %c0_114] : memref<8x128xf32, #tpu.memory_space<vmem>>, vector<8x128xf32>
    tpu.vector_store %arg3[%c0_113, %c0_114], %315 {strides = array<i32>} : memref<8x128xf32, #tpu.memory_space<vmem>>, vector<8x128xf32>,
    return
  }
  func.func @transform_0(%arg0: i32) -> (i32, i32, i32) {
    %c0_i32 = arith.constant 0 : i32
    %c0_i32_0 = arith.constant 0 : i32
    %c0_i32_1 = arith.constant 0 : i32
    return %c0_i32, %arg0, %c0_i32_0 : i32, i32, i32
  }
  func.func @transform_1(%arg0: i32) -> (i32, i32) {
    %c0_i32 = arith.constant 0 : i32
    %c0_i32_0 = arith.constant 0 : i32
    %c0_i32_1 = arith.constant 0 : i32
    return %c0_i32, %c0_i32_0 : i32, i32
  }
  func.func @transform_2(%arg0: i32) -> (i32, i32) {
    %c0_i32 = arith.constant 0 : i32
    %c0_i32_0 = arith.constant 0 : i32
    return %arg0, %c0_i32 : i32, i32
  }
}

</mosaic_0001>

<llo_original>
// kernel: tpu_custom_call.1
$region0: #{tpu_custom_call.1}
  #allocation0 [shape = 'u32[]', space=smem, size = 0x4, offset = 0x4, fixed_abs, tag = 'smem constant byte address 0x4 - core index']
  #allocation1 [shape = 'u32[144,128]{1,0:T(1,128)}', space=vmem, size = 0x12000, scoped, tag = 'internal scratch']
  %s0 = inlined_call_operand.hbm [shape: f32[8,8,16], index: 0, kind: input, shape index: {}]
  %s1 = inlined_call_operand.hbm [shape: f32[96,128], index: 1, kind: input, shape index: {}]
  %s2 = inlined_call_operand.hbm [shape: f32[8,128], index: 2, kind: output, shape index: {}]
  %s3 = sld [smem:[#allocation0]]
  $region26: #{tpu_custom_call.1} parent=0
    _
  %s5 = ssub.s32 1, %s3
  %s6 = scalar_select 0, %s5, %s3
  $region1: #{tpu_custom_call.1} parent=0
    #allocation2 [shape = 'u8[32768]{0}', space=vmem, size = 0x8000, scoped, tag = 'input window, operand 0, single buffered']
    #allocation3 [shape = 's32[1]{0}', space=sflag, size = 0x4, scoped, tag = 'scoped memory for tpu_custom_call.1']
    #allocation4 [shape = 's32[1]{0}', space=sflag, size = 0x4, scoped, tag = 'scoped memory for tpu_custom_call.1']
    #allocation5 [shape = 'u8[49152]{0}', space=vmem, size = 0xc000, scoped, tag = 'input window, operand 1, single buffered']
    #allocation6 [shape = 's32[1]{0}', space=sflag, size = 0x4, scoped, tag = 'scoped memory for tpu_custom_call.1']
    #allocation7 [shape = 'u8[4096]{0}', space=vmem, size = 0x1000, scoped, tag = 'output window, operand 0, single buffered']
    %7 = vsyncpa [#allocation3], 0
    %8 = vsyncpa [#allocation6], 0
    %9 = vsyncpa [#allocation4], 0
    // Predicated region
    $region2: #{tpu_custom_call.1} parent=1 // pred_check
      _
    $region3: #{tpu_custom_call.1} parent=1 // pred_check_branch
      %11 = sbr.rel (0) target = $region5
    $region4: #{tpu_custom_call.1} parent=1 // pred_region
      %s13 = ssub.s32 1024, 1024
      %14 = vsyncadd [#allocation3], %s13
      %s15 = sshll.u32 [#allocation2], 4
      %s16 = int_to_ptr.vmem [resolvable:$true] %s15
      %21 = dma.hbm_to_vmem [thread:$0]  %s0, 1024, %s16, [#allocation3], 128, 128, 8
    $region5: #{tpu_custom_call.1} parent=1 // pred_fallthru
      _
    // Predicated region
    $region6: #{tpu_custom_call.1} parent=1 // pred_check
      _
    $region7: #{tpu_custom_call.1} parent=1 // pred_check_branch
      %23 = sbr.rel (0) target = $region9
    $region8: #{tpu_custom_call.1} parent=1 // pred_region
      %s25 = ssub.s32 1536, 1536
      %26 = vsyncadd [#allocation6], %s25
      %s27 = sshll.u32 [#allocation5], 4
      %s28 = int_to_ptr.vmem [resolvable:$true] %s27
      %33 = dma.hbm_to_vmem [thread:$0]  %s1, 1536, %s28, [#allocation6], 128, 128, 8
    $region9: #{tpu_custom_call.1} parent=1 // pred_fallthru
      _
    // Predicated region
    $region10: #{tpu_custom_call.1} parent=1 // pred_check
      _
    $region11: #{tpu_custom_call.1} parent=1 // pred_check_branch
      %35 = sbr.rel (0) target = $region13
    $region12: #{tpu_custom_call.1} parent=1 // pred_region
      %36 = dma.done [#allocation3], 1024
    $region13: #{tpu_custom_call.1} parent=1 // pred_fallthru
      _
    // Predicated region
    $region14: #{tpu_custom_call.1} parent=1 // pred_check
      _
    $region15: #{tpu_custom_call.1} parent=1 // pred_check_branch
      %38 = sbr.rel (0) target = $region17
    $region16: #{tpu_custom_call.1} parent=1 // pred_region
      %39 = dma.done [#allocation6], 1536
    $region17: #{tpu_custom_call.1} parent=1 // pred_fallthru
      _
    %v40 = vld [vmem:[#allocation5] sm:$0xff]
    %v41 = vld [vmem:[#allocation5 + $0x8] sm:$0xff]
    %v42 = vld [vmem:[#allocation5 + $0x10] sm:$0xff]
    %v43 = vld [vmem:[#allocation5 + $0x18] sm:$0xff]
    %v44 = vld [vmem:[#allocation5 + $0x20] sm:$0xff]
    %v45 = vld [vmem:[#allocation5 + $0x28] sm:$0xff]
    %v46 = vld [vmem:[#allocation5 + $0x30] sm:$0x1]
    %v47 = vld [vmem:[#allocation5 + $0x38] sm:$0xff]
    %v48 = vld [vmem:[#allocation5 + $0x40] sm:$0xff]
    %v49 = vld [vmem:[#allocation5 + $0x48] sm:$0xff]
    %v50 = vld [vmem:[#allocation5 + $0x50] sm:$0xff]
    %v51 = vld [vmem:[#allocation5 + $0x58] sm:$0x1]
    %v52 = vld [vmem:[#allocation2] sm:$0xff]
    %vm53 = vcmask 261120
    %v55 = vsel %vm53, 0.0, 0
    %57 = vmatprep.subr.mxu0 0.0
    %58 = vmatpush1.msra.mxu0 %v42
    %59 = vmatprep.subr.mxu0 0.0
    %60 = vmatpush1.msra.mxu0 %v43
    %61 = vmatprep.subr.mxu0 0.0
    %62 = vmatpush1.msra.mxu0 %v44
    %63 = vmatprep.subr.mxu0 0.0
    %64 = vmatpush1.msra.mxu0 %v45
    %65 = vmatprep.subr.mxu0 0.0
    %66 = vmatpush1.msra.mxu0 0.0
    %67 = vmatprep.subr.mxu0 0.0
    %68 = vmatpush1.msra.mxu0 0.0
    %69 = vmatprep.subr.mxu0 0.0
    %70 = vmatpush1.msra.mxu0 0.0
    %71 = vmatprep.subr.mxu0 0.0
    %72 = vmatpush1.msra.mxu0 0.0
    %73 = vmatprep.subr.mxu0 0.0
    %74 = vmatpush1.msra.mxu0 0.0
    %75 = vmatprep.subr.mxu0 0.0
    %76 = vmatpush1.msra.mxu0 0.0
    %77 = vmatprep.subr.mxu0 0.0
    %78 = vmatpush1.msra.mxu0 0.0
    %79 = vmatprep.subr.mxu0 0.0
    %80 = vmatpush1.msra.mxu0 0.0
    %81 = vmatprep.subr.mxu0 0.0
    %82 = vmatpush1.msra.mxu0 0.0
    %83 = vmatprep.subr.mxu0 0.0
    %84 = vmatpush1.msra.mxu0 0.0
    %85 = vmatprep.subr.mxu0 0.0
    %86 = vmatpush1.msra.mxu0 0.0
    %87 = vmatprep.subr.mxu0 0.0
    %88 = vmatpush1.msra.mxu0 0.0
    %89 = vmatprep.subr.mxu0 0.0
    %90 = vmatpush1.msra.mxu0 0.0
    %91 = vmatprep.subr.mxu0 0.0
    %92 = vmatpush1.msra.mxu0 0.0
    %93 = vmatprep.subr.mxu0 0.0
    %94 = vmatpush1.msra.mxu0 0.0
    %95 = vmatprep.subr.mxu0 0.0
    %96 = vmatpush1.msra.mxu0 0.0
    %97 = vmatprep.subr.mxu0 0.0
    %98 = vmatpush1.msra.mxu0 0.0
    %99 = vmatprep.subr.mxu0 0.0
    %100 = vmatpush1.msra.mxu0 0.0
    %101 = vmatprep.subr.mxu0 0.0
    %102 = vmatpush1.msra.mxu0 0.0
    %103 = vmatprep.subr.mxu0 0.0
    %104 = vmatpush1.msra.mxu0 0.0
    %105 = vmatprep.subr.mxu0 0.0
    %106 = vmatpush1.msra.mxu0 0.0
    %107 = vmatprep.subr.mxu0 0.0
    %108 = vmatpush1.msra.mxu0 0.0
    %109 = vmatprep.subr.mxu0 0.0
    %110 = vmatpush1.msra.mxu0 0.0
    %111 = vmatprep.subr.mxu0 0.0
    %112 = vmatpush1.msra.mxu0 0.0
    %113 = vmatprep.subr.mxu0 0.0
    %114 = vmatpush1.msra.mxu0 0.0
    %115 = vmatprep.subr.mxu0 0.0
    %116 = vmatpush1.msra.mxu0 0.0
    %117 = vmatprep.subr.mxu0 0.0
    %118 = vmatpush1.msra.mxu0 0.0
    %119 = vmatprep.subr.mxu0 0.0
    %120 = vmatpush1.msra.mxu0 0.0
    %121 = vmatprep.mubr.f32.mxu0 0.0
    %122 = vmatmul.mubr.f32.gmra.mrb[0].mxu0 %v55
    %v123 = vpop.f32.mrb[0].mxu0
    %v124 = vadd.f32 0.0, %v123
    %v125 = vpop.f32.mrb[0].mxu0
    %126 = vdwg.mxu0
    %vm127 = vcmask 130048
    %v129 = vsel %vm127, %v52, 0
    %131 = vmatprep.subr.mxu0 0.0
    %132 = vmatpush1.msra.mxu0 %v40
    %133 = vmatprep.subr.mxu0 0.0
    %134 = vmatpush1.msra.mxu0 %v41
    %135 = vmatprep.subr.mxu0 0.0
    %136 = vmatpush1.msra.mxu0 0.0
    %137 = vmatprep.subr.mxu0 0.0
    %138 = vmatpush1.msra.mxu0 0.0
    %139 = vmatprep.subr.mxu0 0.0
    %140 = vmatpush1.msra.mxu0 0.0
    %141 = vmatprep.subr.mxu0 0.0
    %142 = vmatpush1.msra.mxu0 0.0
    %143 = vmatprep.subr.mxu0 0.0
    %144 = vmatpush1.msra.mxu0 0.0
    %145 = vmatprep.subr.mxu0 0.0
    %146 = vmatpush1.msra.mxu0 0.0
    %147 = vmatprep.subr.mxu0 0.0
    %148 = vmatpush1.msra.mxu0 0.0
    %149 = vmatprep.subr.mxu0 0.0
    %150 = vmatpush1.msra.mxu0 0.0
    %151 = vmatprep.subr.mxu0 0.0
    %152 = vmatpush1.msra.mxu0 0.0
    %153 = vmatprep.subr.mxu0 0.0
    %154 = vmatpush1.msra.mxu0 0.0
    %155 = vmatprep.subr.mxu0 0.0
    %156 = vmatpush1.msra.mxu0 0.0
    %157 = vmatprep.subr.mxu0 0.0
    %158 = vmatpush1.msra.mxu0 0.0
    %159 = vmatprep.subr.mxu0 0.0
    %160 = vmatpush1.msra.mxu0 0.0
    %161 = vmatprep.subr.mxu0 0.0
    %162 = vmatpush1.msra.mxu0 0.0
    %163 = vmatprep.subr.mxu0 0.0
    %164 = vmatpush1.msra.mxu0 0.0
    %165 = vmatprep.subr.mxu0 0.0
    %166 = vmatpush1.msra.mxu0 0.0
    %167 = vmatprep.subr.mxu0 0.0
    %168 = vmatpush1.msra.mxu0 0.0
    %169 = vmatprep.subr.mxu0 0.0
    %170 = vmatpush1.msra.mxu0 0.0
    %171 = vmatprep.subr.mxu0 0.0
    %172 = vmatpush1.msra.mxu0 0.0
    %173 = vmatprep.subr.mxu0 0.0
    %174 = vmatpush1.msra.mxu0 0.0
    %175 = vmatprep.subr.mxu0 0.0
    %176 = vmatpush1.msra.mxu0 0.0
    %177 = vmatprep.subr.mxu0 0.0
    %178 = vmatpush1.msra.mxu0 0.0
    %179 = vmatprep.subr.mxu0 0.0
    %180 = vmatpush1.msra.mxu0 0.0
    %181 = vmatprep.subr.mxu0 0.0
    %182 = vmatpush1.msra.mxu0 0.0
    %183 = vmatprep.subr.mxu0 0.0
    %184 = vmatpush1.msra.mxu0 0.0
    %185 = vmatprep.subr.mxu0 0.0
    %186 = vmatpush1.msra.mxu0 0.0
    %187 = vmatprep.subr.mxu0 0.0
    %188 = vmatpush1.msra.mxu0 0.0
    %189 = vmatprep.subr.mxu0 0.0
    %190 = vmatpush1.msra.mxu0 0.0
    %191 = vmatprep.subr.mxu0 0.0
    %192 = vmatpush1.msra.mxu0 0.0
    %193 = vmatprep.subr.mxu0 0.0
    %194 = vmatpush1.msra.mxu0 0.0
    %195 = vmatprep.mubr.f32.mxu0 0.0
    %196 = vmatmul.mubr.f32.gmra.mrb[0].mxu0 %v129
    %v197 = vpop.f32.mrb[0].mxu0
    %v198 = vadd.f32 %v124, %v197
    %v199 = vpop.f32.mrb[0].mxu0
    %200 = vdwg.mxu0
    %v201 = vlaneseq
    %v202 = vshrl.u32 %v201, 7
    %v203 = vsub.s32 0, %v202
    %v204 = vrot.slane %v46, %v203
    %v205 = vadd.f32 %v198, %v204
    %v206 = vsub.f32 0.0, %v205
    %v207 = vmul.f32 %v206, 1.442695
    %v208 = vpow.pop %v207
    %v209 = vadd.f32 %v208, 1.0
    %v210 = vrcp.pop %v209
    %v211 = vmul.f32 1.0, %v210
    %v212 = vtanh.pop %v205
    %v213 = vmul.f32 %v211, 0.0
    %215 = vrot.lane.b32.xlu0 %v212, 64
    %v216 = vpop.permute.xlu0 %215
    %v218 = vmul.f32 %v211, %v216
    %220 = vrot.lane.b32.xlu0 %v218, 32
    %v221 = vpop.permute.xlu0 %220
    %v223 = vadd.f32 %v213, %v221
    %v224 = vtanh.pop %v223
    %226 = vrot.lane.b32.xlu0 %v224, 64
    %v227 = vpop.permute.xlu0 %226
    %v229 = vmul.f32 %v211, %v227
    %s230 = scalar_lea.vmem [#allocation2], 8
    %v231 = vld [vmem:[%s230] sm:$0xff]
    %233 = vrot.lane.b32.xlu0 %v229, 32
    %v234 = vpop.permute.xlu0 %233
    %v235 = vsel %vm53, %v234, 0
    %237 = vmatprep.subr.mxu0 0.0
    %238 = vmatpush1.msra.mxu0 %v42
    %239 = vmatprep.subr.mxu0 0.0
    %240 = vmatpush1.msra.mxu0 %v43
    %241 = vmatprep.subr.mxu0 0.0
    %242 = vmatpush1.msra.mxu0 %v44
    %243 = vmatprep.subr.mxu0 0.0
    %244 = vmatpush1.msra.mxu0 %v45
    %245 = vmatprep.subr.mxu0 0.0
    %246 = vmatpush1.msra.mxu0 0.0
    %247 = vmatprep.subr.mxu0 0.0
    %248 = vmatpush1.msra.mxu0 0.0
    %249 = vmatprep.subr.mxu0 0.0
    %250 = vmatpush1.msra.mxu0 0.0
    %251 = vmatprep.subr.mxu0 0.0
    %252 = vmatpush1.msra.mxu0 0.0
    %253 = vmatprep.subr.mxu0 0.0
    %254 = vmatpush1.msra.mxu0 0.0
    %255 = vmatprep.subr.mxu0 0.0
    %256 = vmatpush1.msra.mxu0 0.0
    %257 = vmatprep.subr.mxu0 0.0
    %258 = vmatpush1.msra.mxu0 0.0
    %259 = vmatprep.subr.mxu0 0.0
    %260 = vmatpush1.msra.mxu0 0.0
    %261 = vmatprep.subr.mxu0 0.0
    %262 = vmatpush1.msra.mxu0 0.0
    %263 = vmatprep.subr.mxu0 0.0
    %264 = vmatpush1.msra.mxu0 0.0
    %265 = vmatprep.subr.mxu0 0.0
    %266 = vmatpush1.msra.mxu0 0.0
    %267 = vmatprep.subr.mxu0 0.0
    %268 = vmatpush1.msra.mxu0 0.0
    %269 = vmatprep.subr.mxu0 0.0
    %270 = vmatpush1.msra.mxu0 0.0
    %271 = vmatprep.subr.mxu0 0.0
    %272 = vmatpush1.msra.mxu0 0.0
    %273 = vmatprep.subr.mxu0 0.0
    %274 = vmatpush1.msra.mxu0 0.0
    %275 = vmatprep.subr.mxu0 0.0
    %276 = vmatpush1.msra.mxu0 0.0
    %277 = vmatprep.subr.mxu0 0.0
    %278 = vmatpush1.msra.mxu0 0.0
    %279 = vmatprep.subr.mxu0 0.0
    %280 = vmatpush1.msra.mxu0 0.0
    %281 = vmatprep.subr.mxu0 0.0
    %282 = vmatpush1.msra.mxu0 0.0
    %283 = vmatprep.subr.mxu0 0.0
    %284 = vmatpush1.msra.mxu0 0.0
    %285 = vmatprep.subr.mxu0 0.0
    %286 = vmatpush1.msra.mxu0 0.0
    %287 = vmatprep.subr.mxu0 0.0
    %288 = vmatpush1.msra.mxu0 0.0
    %289 = vmatprep.subr.mxu0 0.0
    %290 = vmatpush1.msra.mxu0 0.0
    %291 = vmatprep.subr.mxu0 0.0
    %292 = vmatpush1.msra.mxu0 0.0
    %293 = vmatprep.subr.mxu0 0.0
    %294 = vmatpush1.msra.mxu0 0.0
    %295 = vmatprep.subr.mxu0 0.0
    %296 = vmatpush1.msra.mxu0 0.0
    %297 = vmatprep.subr.mxu0 0.0
    %298 = vmatpush1.msra.mxu0 0.0
    %299 = vmatprep.subr.mxu0 0.0
    %300 = vmatpush1.msra.mxu0 0.0
    %301 = vmatprep.mubr.f32.mxu0 0.0
    %302 = vmatmul.mubr.f32.gmra.mrb[0].mxu0 %v235
    %v303 = vpop.f32.mrb[0].mxu0
    %v304 = vadd.f32 0.0, %v303
    %v305 = vpop.f32.mrb[0].mxu0
    %306 = vdwg.mxu0
    %v308 = vsel %vm127, %v231, 0
    %310 = vmatprep.subr.mxu0 0.0
    %311 = vmatpush1.msra.mxu0 %v40
    %312 = vmatprep.subr.mxu0 0.0
    %313 = vmatpush1.msra.mxu0 %v41
    %314 = vmatprep.subr.mxu0 0.0
    %315 = vmatpush1.msra.mxu0 0.0
    %316 = vmatprep.subr.mxu0 0.0
    %317 = vmatpush1.msra.mxu0 0.0
    %318 = vmatprep.subr.mxu0 0.0
    %319 = vmatpush1.msra.mxu0 0.0
    %320 = vmatprep.subr.mxu0 0.0
    %321 = vmatpush1.msra.mxu0 0.0
    %322 = vmatprep.subr.mxu0 0.0
    %323 = vmatpush1.msra.mxu0 0.0
    %324 = vmatprep.subr.mxu0 0.0
    %325 = vmatpush1.msra.mxu0 0.0
    %326 = vmatprep.subr.mxu0 0.0
    %327 = vmatpush1.msra.mxu0 0.0
    %328 = vmatprep.subr.mxu0 0.0
    %329 = vmatpush1.msra.mxu0 0.0
    %330 = vmatprep.subr.mxu0 0.0
    %331 = vmatpush1.msra.mxu0 0.0
    %332 = vmatprep.subr.mxu0 0.0
    %333 = vmatpush1.msra.mxu0 0.0
    %334 = vmatprep.subr.mxu0 0.0
    %335 = vmatpush1.msra.mxu0 0.0
    %336 = vmatprep.subr.mxu0 0.0
    %337 = vmatpush1.msra.mxu0 0.0
    %338 = vmatprep.subr.mxu0 0.0
    %339 = vmatpush1.msra.mxu0 0.0
    %340 = vmatprep.subr.mxu0 0.0
    %341 = vmatpush1.msra.mxu0 0.0
    %342 = vmatprep.subr.mxu0 0.0
    %343 = vmatpush1.msra.mxu0 0.0
    %344 = vmatprep.subr.mxu0 0.0
    %345 = vmatpush1.msra.mxu0 0.0
    %346 = vmatprep.subr.mxu0 0.0
    %347 = vmatpush1.msra.mxu0 0.0
    %348 = vmatprep.subr.mxu0 0.0
    %349 = vmatpush1.msra.mxu0 0.0
    %350 = vmatprep.subr.mxu0 0.0
    %351 = vmatpush1.msra.mxu0 0.0
    %352 = vmatprep.subr.mxu0 0.0
    %353 = vmatpush1.msra.mxu0 0.0
    %354 = vmatprep.subr.mxu0 0.0
    %355 = vmatpush1.msra.mxu0 0.0
    %356 = vmatprep.subr.mxu0 0.0
    %357 = vmatpush1.msra.mxu0 0.0
    %358 = vmatprep.subr.mxu0 0.0
    %359 = vmatpush1.msra.mxu0 0.0
    %360 = vmatprep.subr.mxu0 0.0
    %361 = vmatpush1.msra.mxu0 0.0
    %362 = vmatprep.subr.mxu0 0.0
    %363 = vmatpush1.msra.mxu0 0.0
    %364 = vmatprep.subr.mxu0 0.0
    %365 = vmatpush1.msra.mxu0 0.0
    %366 = vmatprep.subr.mxu0 0.0
    %367 = vmatpush1.msra.mxu0 0.0
    %368 = vmatprep.subr.mxu0 0.0
    %369 = vmatpush1.msra.mxu0 0.0
    %370 = vmatprep.subr.mxu0 0.0
    %371 = vmatpush1.msra.mxu0 0.0
    %372 = vmatprep.subr.mxu0 0.0
    %373 = vmatpush1.msra.mxu0 0.0
    %374 = vmatprep.mubr.f32.mxu0 0.0
    %375 = vmatmul.mubr.f32.gmra.mrb[0].mxu0 %v308
    %v376 = vpop.f32.mrb[0].mxu0
    %v377 = vadd.f32 %v304, %v376
    %v378 = vpop.f32.mrb[0].mxu0
    %379 = vdwg.mxu0
    %v380 = vadd.f32 %v377, %v204
    %v381 = vsub.f32 0.0, %v380
    %v382 = vmul.f32 %v381, 1.442695
    %v383 = vpow.pop %v382
    %v384 = vadd.f32 %v383, 1.0
    %v385 = vrcp.pop %v384
    %v386 = vmul.f32 1.0, %v385
    %v387 = vtanh.pop %v380
    %v388 = vmul.f32 %v386, %v223
    %390 = vrot.lane.b32.xlu0 %v387, 64
    %v391 = vpop.permute.xlu0 %390
    %v393 = vmul.f32 %v386, %v391
    %395 = vrot.lane.b32.xlu0 %v393, 32
    %v396 = vpop.permute.xlu0 %395
    %v398 = vadd.f32 %v388, %v396
    %v399 = vtanh.pop %v398
    %401 = vrot.lane.b32.xlu0 %v399, 64
    %v402 = vpop.permute.xlu0 %401
    %v404 = vmul.f32 %v386, %v402
    %s405 = scalar_lea.vmem [#allocation2], 16
    %v406 = vld [vmem:[%s405] sm:$0xff]
    %408 = vrot.lane.b32.xlu0 %v404, 32
    %v409 = vpop.permute.xlu0 %408
    %v410 = vsel %vm53, %v409, 0
    %412 = vmatprep.subr.mxu0 0.0
    %413 = vmatpush1.msra.mxu0 %v42
    %414 = vmatprep.subr.mxu0 0.0
    %415 = vmatpush1.msra.mxu0 %v43
    %416 = vmatprep.subr.mxu0 0.0
    %417 = vmatpush1.msra.mxu0 %v44
    %418 = vmatprep.subr.mxu0 0.0
    %419 = vmatpush1.msra.mxu0 %v45
    %420 = vmatprep.subr.mxu0 0.0
    %421 = vmatpush1.msra.mxu0 0.0
    %422 = vmatprep.subr.mxu0 0.0
    %423 = vmatpush1.msra.mxu0 0.0
    %424 = vmatprep.subr.mxu0 0.0
    %425 = vmatpush1.msra.mxu0 0.0
    %426 = vmatprep.subr.mxu0 0.0
    %427 = vmatpush1.msra.mxu0 0.0
    %428 = vmatprep.subr.mxu0 0.0
    %429 = vmatpush1.msra.mxu0 0.0
    %430 = vmatprep.subr.mxu0 0.0
    %431 = vmatpush1.msra.mxu0 0.0
    %432 = vmatprep.subr.mxu0 0.0
    %433 = vmatpush1.msra.mxu0 0.0
    %434 = vmatprep.subr.mxu0 0.0
    %435 = vmatpush1.msra.mxu0 0.0
    %436 = vmatprep.subr.mxu0 0.0
    %437 = vmatpush1.msra.mxu0 0.0
    %438 = vmatprep.subr.mxu0 0.0
    %439 = vmatpush1.msra.mxu0 0.0
    %440 = vmatprep.subr.mxu0 0.0
    %441 = vmatpush1.msra.mxu0 0.0
    %442 = vmatprep.subr.mxu0 0.0
    %443 = vmatpush1.msra.mxu0 0.0
    %444 = vmatprep.subr.mxu0 0.0
    %445 = vmatpush1.msra.mxu0 0.0
    %446 = vmatprep.subr.mxu0 0.0
    %447 = vmatpush1.msra.mxu0 0.0
    %448 = vmatprep.subr.mxu0 0.0
    %449 = vmatpush1.msra.mxu0 0.0
    %450 = vmatprep.subr.mxu0 0.0
    %451 = vmatpush1.msra.mxu0 0.0
    %452 = vmatprep.subr.mxu0 0.0
    %453 = vmatpush1.msra.mxu0 0.0
    %454 = vmatprep.subr.mxu0 0.0
    %455 = vmatpush1.msra.mxu0 0.0
    %456 = vmatprep.subr.mxu0 0.0
    %457 = vmatpush1.msra.mxu0 0.0
    %458 = vmatprep.subr.mxu0 0.0
    %459 = vmatpush1.msra.mxu0 0.0
    %460 = vmatprep.subr.mxu0 0.0
    %461 = vmatpush1.msra.mxu0 0.0
    %462 = vmatprep.subr.mxu0 0.0
    %463 = vmatpush1.msra.mxu0 0.0
    %464 = vmatprep.subr.mxu0 0.0
    %465 = vmatpush1.msra.mxu0 0.0
    %466 = vmatprep.subr.mxu0 0.0
    %467 = vmatpush1.msra.mxu0 0.0
    %468 = vmatprep.subr.mxu0 0.0
    %469 = vmatpush1.msra.mxu0 0.0
    %470 = vmatprep.subr.mxu0 0.0
    %471 = vmatpush1.msra.mxu0 0.0
    %472 = vmatprep.subr.mxu0 0.0
    %473 = vmatpush1.msra.mxu0 0.0
    %474 = vmatprep.subr.mxu0 0.0
    %475 = vmatpush1.msra.mxu0 0.0
    %476 = vmatprep.mubr.f32.mxu0 0.0
    %477 = vmatmul.mubr.f32.gmra.mrb[0].mxu0 %v410
    %v478 = vpop.f32.mrb[0].mxu0
    %v479 = vadd.f32 0.0, %v478
    %v480 = vpop.f32.mrb[0].mxu0
    %481 = vdwg.mxu0
    %v483 = vsel %vm127, %v406, 0
    %485 = vmatprep.subr.mxu0 0.0
    %486 = vmatpush1.msra.mxu0 %v40
    %487 = vmatprep.subr.mxu0 0.0
    %488 = vmatpush1.msra.mxu0 %v41
    %489 = vmatprep.subr.mxu0 0.0
    %490 = vmatpush1.msra.mxu0 0.0
    %491 = vmatprep.subr.mxu0 0.0
    %492 = vmatpush1.msra.mxu0 0.0
    %493 = vmatprep.subr.mxu0 0.0
    %494 = vmatpush1.msra.mxu0 0.0
    %495 = vmatprep.subr.mxu0 0.0
    %496 = vmatpush1.msra.mxu0 0.0
    %497 = vmatprep.subr.mxu0 0.0
    %498 = vmatpush1.msra.mxu0 0.0
    %499 = vmatprep.subr.mxu0 0.0
    %500 = vmatpush1.msra.mxu0 0.0
    %501 = vmatprep.subr.mxu0 0.0
    %502 = vmatpush1.msra.mxu0 0.0
    %503 = vmatprep.subr.mxu0 0.0
    %504 = vmatpush1.msra.mxu0 0.0
    %505 = vmatprep.subr.mxu0 0.0
    %506 = vmatpush1.msra.mxu0 0.0
    %507 = vmatprep.subr.mxu0 0.0
    %508 = vmatpush1.msra.mxu0 0.0
    %509 = vmatprep.subr.mxu0 0.0
    %510 = vmatpush1.msra.mxu0 0.0
    %511 = vmatprep.subr.mxu0 0.0
    %512 = vmatpush1.msra.mxu0 0.0
    %513 = vmatprep.subr.mxu0 0.0
    %514 = vmatpush1.msra.mxu0 0.0
    %515 = vmatprep.subr.mxu0 0.0
    %516 = vmatpush1.msra.mxu0 0.0
    %517 = vmatprep.subr.mxu0 0.0
    %518 = vmatpush1.msra.mxu0 0.0
    %519 = vmatprep.subr.mxu0 0.0
    %520 = vmatpush1.msra.mxu0 0.0
    %521 = vmatprep.subr.mxu0 0.0
    %522 = vmatpush1.msra.mxu0 0.0
    %523 = vmatprep.subr.mxu0 0.0
    %524 = vmatpush1.msra.mxu0 0.0
    %525 = vmatprep.subr.mxu0 0.0
    %526 = vmatpush1.msra.mxu0 0.0
    %527 = vmatprep.subr.mxu0 0.0
    %528 = vmatpush1.msra.mxu0 0.0
    %529 = vmatprep.subr.mxu0 0.0
    %530 = vmatpush1.msra.mxu0 0.0
    %531 = vmatprep.subr.mxu0 0.0
    %532 = vmatpush1.msra.mxu0 0.0
    %533 = vmatprep.subr.mxu0 0.0
    %534 = vmatpush1.msra.mxu0 0.0
    %535 = vmatprep.subr.mxu0 0.0
    %536 = vmatpush1.msra.mxu0 0.0
    %537 = vmatprep.subr.mxu0 0.0
    %538 = vmatpush1.msra.mxu0 0.0
    %539 = vmatprep.subr.mxu0 0.0
    %540 = vmatpush1.msra.mxu0 0.0
    %541 = vmatprep.subr.mxu0 0.0
    %542 = vmatpush1.msra.mxu0 0.0
    %543 = vmatprep.subr.mxu0 0.0
    %544 = vmatpush1.msra.mxu0 0.0
    %545 = vmatprep.subr.mxu0 0.0
    %546 = vmatpush1.msra.mxu0 0.0
    %547 = vmatprep.subr.mxu0 0.0
    %548 = vmatpush1.msra.mxu0 0.0
    %549 = vmatprep.mubr.f32.mxu0 0.0
    %550 = vmatmul.mubr.f32.gmra.mrb[0].mxu0 %v483
    %v551 = vpop.f32.mrb[0].mxu0
    %v552 = vadd.f32 %v479, %v551
    %v553 = vpop.f32.mrb[0].mxu0
    %554 = vdwg.mxu0
    %v555 = vadd.f32 %v552, %v204
    %v556 = vsub.f32 0.0, %v555
    %v557 = vmul.f32 %v556, 1.442695
    %v558 = vpow.pop %v557
    %v559 = vadd.f32 %v558, 1.0
    %v560 = vrcp.pop %v559
    %v561 = vmul.f32 1.0, %v560
    %v562 = vtanh.pop %v555
    %v563 = vmul.f32 %v561, %v398
    %565 = vrot.lane.b32.xlu0 %v562, 64
    %v566 = vpop.permute.xlu0 %565
    %v568 = vmul.f32 %v561, %v566
    %570 = vrot.lane.b32.xlu0 %v568, 32
    %v571 = vpop.permute.xlu0 %570
    %v573 = vadd.f32 %v563, %v571
    %v574 = vtanh.pop %v573
    %576 = vrot.lane.b32.xlu0 %v574, 64
    %v577 = vpop.permute.xlu0 %576
    %v579 = vmul.f32 %v561, %v577
    %s580 = scalar_lea.vmem [#allocation2], 24
    %v581 = vld [vmem:[%s580] sm:$0xff]
    %583 = vrot.lane.b32.xlu0 %v579, 32
    %v584 = vpop.permute.xlu0 %583
    %v585 = vsel %vm53, %v584, 0
    %587 = vmatprep.subr.mxu0 0.0
    %588 = vmatpush1.msra.mxu0 %v42
    %589 = vmatprep.subr.mxu0 0.0
    %590 = vmatpush1.msra.mxu0 %v43
    %591 = vmatprep.subr.mxu0 0.0
    %592 = vmatpush1.msra.mxu0 %v44
    %593 = vmatprep.subr.mxu0 0.0
    %594 = vmatpush1.msra.mxu0 %v45
    %595 = vmatprep.subr.mxu0 0.0
    %596 = vmatpush1.msra.mxu0 0.0
    %597 = vmatprep.subr.mxu0 0.0
    %598 = vmatpush1.msra.mxu0 0.0
    %599 = vmatprep.subr.mxu0 0.0
    %600 = vmatpush1.msra.mxu0 0.0
    %601 = vmatprep.subr.mxu0 0.0
    %602 = vmatpush1.msra.mxu0 0.0
    %603 = vmatprep.subr.mxu0 0.0
    %604 = vmatpush1.msra.mxu0 0.0
    %605 = vmatprep.subr.mxu0 0.0
    %606 = vmatpush1.msra.mxu0 0.0
    %607 = vmatprep.subr.mxu0 0.0
    %608 = vmatpush1.msra.mxu0 0.0
    %609 = vmatprep.subr.mxu0 0.0
    %610 = vmatpush1.msra.mxu0 0.0
    %611 = vmatprep.subr.mxu0 0.0
    %612 = vmatpush1.msra.mxu0 0.0
    %613 = vmatprep.subr.mxu0 0.0
    %614 = vmatpush1.msra.mxu0 0.0
    %615 = vmatprep.subr.mxu0 0.0
    %616 = vmatpush1.msra.mxu0 0.0
    %617 = vmatprep.subr.mxu0 0.0
    %618 = vmatpush1.msra.mxu0 0.0
    %619 = vmatprep.subr.mxu0 0.0
    %620 = vmatpush1.msra.mxu0 0.0
    %621 = vmatprep.subr.mxu0 0.0
    %622 = vmatpush1.msra.mxu0 0.0
    %623 = vmatprep.subr.mxu0 0.0
    %624 = vmatpush1.msra.mxu0 0.0
    %625 = vmatprep.subr.mxu0 0.0
    %626 = vmatpush1.msra.mxu0 0.0
    %627 = vmatprep.subr.mxu0 0.0
    %628 = vmatpush1.msra.mxu0 0.0
    %629 = vmatprep.subr.mxu0 0.0
    %630 = vmatpush1.msra.mxu0 0.0
    %631 = vmatprep.subr.mxu0 0.0
    %632 = vmatpush1.msra.mxu0 0.0
    %633 = vmatprep.subr.mxu0 0.0
    %634 = vmatpush1.msra.mxu0 0.0
    %635 = vmatprep.subr.mxu0 0.0
    %636 = vmatpush1.msra.mxu0 0.0
    %637 = vmatprep.subr.mxu0 0.0
    %638 = vmatpush1.msra.mxu0 0.0
    %639 = vmatprep.subr.mxu0 0.0
    %640 = vmatpush1.msra.mxu0 0.0
    %641 = vmatprep.subr.mxu0 0.0
    %642 = vmatpush1.msra.mxu0 0.0
    %643 = vmatprep.subr.mxu0 0.0
    %644 = vmatpush1.msra.mxu0 0.0
    %645 = vmatprep.subr.mxu0 0.0
    %646 = vmatpush1.msra.mxu0 0.0
    %647 = vmatprep.subr.mxu0 0.0
    %648 = vmatpush1.msra.mxu0 0.0
    %649 = vmatprep.subr.mxu0 0.0
    %650 = vmatpush1.msra.mxu0 0.0
    %651 = vmatprep.mubr.f32.mxu0 0.0
    %652 = vmatmul.mubr.f32.gmra.mrb[0].mxu0 %v585
    %v653 = vpop.f32.mrb[0].mxu0
    %v654 = vadd.f32 0.0, %v653
    %v655 = vpop.f32.mrb[0].mxu0
    %656 = vdwg.mxu0
    %v658 = vsel %vm127, %v581, 0
    %660 = vmatprep.subr.mxu0 0.0
    %661 = vmatpush1.msra.mxu0 %v40
    %662 = vmatprep.subr.mxu0 0.0
    %663 = vmatpush1.msra.mxu0 %v41
    %664 = vmatprep.subr.mxu0 0.0
    %665 = vmatpush1.msra.mxu0 0.0
    %666 = vmatprep.subr.mxu0 0.0
    %667 = vmatpush1.msra.mxu0 0.0
    %668 = vmatprep.subr.mxu0 0.0
    %669 = vmatpush1.msra.mxu0 0.0
    %670 = vmatprep.subr.mxu0 0.0
    %671 = vmatpush1.msra.mxu0 0.0
    %672 = vmatprep.subr.mxu0 0.0
    %673 = vmatpush1.msra.mxu0 0.0
    %674 = vmatprep.subr.mxu0 0.0
    %675 = vmatpush1.msra.mxu0 0.0
    %676 = vmatprep.subr.mxu0 0.0
    %677 = vmatpush1.msra.mxu0 0.0
    %678 = vmatprep.subr.mxu0 0.0
    %679 = vmatpush1.msra.mxu0 0.0
    %680 = vmatprep.subr.mxu0 0.0
    %681 = vmatpush1.msra.mxu0 0.0
    %682 = vmatprep.subr.mxu0 0.0
    %683 = vmatpush1.msra.mxu0 0.0
    %684 = vmatprep.subr.mxu0 0.0
    %685 = vmatpush1.msra.mxu0 0.0
    %686 = vmatprep.subr.mxu0 0.0
    %687 = vmatpush1.msra.mxu0 0.0
    %688 = vmatprep.subr.mxu0 0.0
    %689 = vmatpush1.msra.mxu0 0.0
    %690 = vmatprep.subr.mxu0 0.0
    %691 = vmatpush1.msra.mxu0 0.0
    %692 = vmatprep.subr.mxu0 0.0
    %693 = vmatpush1.msra.mxu0 0.0
    %694 = vmatprep.subr.mxu0 0.0
    %695 = vmatpush1.msra.mxu0 0.0
    %696 = vmatprep.subr.mxu0 0.0
    %697 = vmatpush1.msra.mxu0 0.0
    %698 = vmatprep.subr.mxu0 0.0
    %699 = vmatpush1.msra.mxu0 0.0
    %700 = vmatprep.subr.mxu0 0.0
    %701 = vmatpush1.msra.mxu0 0.0
    %702 = vmatprep.subr.mxu0 0.0
    %703 = vmatpush1.msra.mxu0 0.0
    %704 = vmatprep.subr.mxu0 0.0
    %705 = vmatpush1.msra.mxu0 0.0
    %706 = vmatprep.subr.mxu0 0.0
    %707 = vmatpush1.msra.mxu0 0.0
    %708 = vmatprep.subr.mxu0 0.0
    %709 = vmatpush1.msra.mxu0 0.0
    %710 = vmatprep.subr.mxu0 0.0
    %711 = vmatpush1.msra.mxu0 0.0
    %712 = vmatprep.subr.mxu0 0.0
    %713 = vmatpush1.msra.mxu0 0.0
    %714 = vmatprep.subr.mxu0 0.0
    %715 = vmatpush1.msra.mxu0 0.0
    %716 = vmatprep.subr.mxu0 0.0
    %717 = vmatpush1.msra.mxu0 0.0
    %718 = vmatprep.subr.mxu0 0.0
    %719 = vmatpush1.msra.mxu0 0.0
    %720 = vmatprep.subr.mxu0 0.0
    %721 = vmatpush1.msra.mxu0 0.0
    %722 = vmatprep.subr.mxu0 0.0
    %723 = vmatpush1.msra.mxu0 0.0
    %724 = vmatprep.mubr.f32.mxu0 0.0
    %725 = vmatmul.mubr.f32.gmra.mrb[0].mxu0 %v658
    %v726 = vpop.f32.mrb[0].mxu0
    %v727 = vadd.f32 %v654, %v726
    %v728 = vpop.f32.mrb[0].mxu0
    %729 = vdwg.mxu0
    %v730 = vadd.f32 %v727, %v204
    %v731 = vsub.f32 0.0, %v730
    %v732 = vmul.f32 %v731, 1.442695
    %v733 = vpow.pop %v732
    %v734 = vadd.f32 %v733, 1.0
    %v735 = vrcp.pop %v734
    %v736 = vmul.f32 1.0, %v735
    %v737 = vtanh.pop %v730
    %v738 = vmul.f32 %v736, %v573
    %740 = vrot.lane.b32.xlu0 %v737, 64
    %v741 = vpop.permute.xlu0 %740
    %v743 = vmul.f32 %v736, %v741
    %745 = vrot.lane.b32.xlu0 %v743, 32
    %v746 = vpop.permute.xlu0 %745
    %v748 = vadd.f32 %v738, %v746
    %v749 = vtanh.pop %v748
    %751 = vrot.lane.b32.xlu0 %v749, 64
    %v752 = vpop.permute.xlu0 %751
    %v754 = vmul.f32 %v736, %v752
    %s755 = scalar_lea.vmem [#allocation2], 32
    %v756 = vld [vmem:[%s755] sm:$0xff]
    %758 = vrot.lane.b32.xlu0 %v754, 32
    %v759 = vpop.permute.xlu0 %758
    %v760 = vsel %vm53, %v759, 0
    %762 = vmatprep.subr.mxu0 0.0
    %763 = vmatpush1.msra.mxu0 %v42
    %764 = vmatprep.subr.mxu0 0.0
    %765 = vmatpush1.msra.mxu0 %v43
    %766 = vmatprep.subr.mxu0 0.0
    %767 = vmatpush1.msra.mxu0 %v44
    %768 = vmatprep.subr.mxu0 0.0
    %769 = vmatpush1.msra.mxu0 %v45
    %770 = vmatprep.subr.mxu0 0.0
    %771 = vmatpush1.msra.mxu0 0.0
    %772 = vmatprep.subr.mxu0 0.0
    %773 = vmatpush1.msra.mxu0 0.0
    %774 = vmatprep.subr.mxu0 0.0
    %775 = vmatpush1.msra.mxu0 0.0
    %776 = vmatprep.subr.mxu0 0.0
    %777 = vmatpush1.msra.mxu0 0.0
    %778 = vmatprep.subr.mxu0 0.0
    %779 = vmatpush1.msra.mxu0 0.0
    %780 = vmatprep.subr.mxu0 0.0
    %781 = vmatpush1.msra.mxu0 0.0
    %782 = vmatprep.subr.mxu0 0.0
    %783 = vmatpush1.msra.mxu0 0.0
    %784 = vmatprep.subr.mxu0 0.0
    %785 = vmatpush1.msra.mxu0 0.0
    %786 = vmatprep.subr.mxu0 0.0
    %787 = vmatpush1.msra.mxu0 0.0
    %788 = vmatprep.subr.mxu0 0.0
    %789 = vmatpush1.msra.mxu0 0.0
    %790 = vmatprep.subr.mxu0 0.0
    %791 = vmatpush1.msra.mxu0 0.0
    %792 = vmatprep.subr.mxu0 0.0
    %793 = vmatpush1.msra.mxu0 0.0
    %794 = vmatprep.subr.mxu0 0.0
    %795 = vmatpush1.msra.mxu0 0.0
    %796 = vmatprep.subr.mxu0 0.0
    %797 = vmatpush1.msra.mxu0 0.0
    %798 = vmatprep.subr.mxu0 0.0
    %799 = vmatpush1.msra.mxu0 0.0
    %800 = vmatprep.subr.mxu0 0.0
    %801 = vmatpush1.msra.mxu0 0.0
    %802 = vmatprep.subr.mxu0 0.0
    %803 = vmatpush1.msra.mxu0 0.0
    %804 = vmatprep.subr.mxu0 0.0
    %805 = vmatpush1.msra.mxu0 0.0
    %806 = vmatprep.subr.mxu0 0.0
    %807 = vmatpush1.msra.mxu0 0.0
    %808 = vmatprep.subr.mxu0 0.0
    %809 = vmatpush1.msra.mxu0 0.0
    %810 = vmatprep.subr.mxu0 0.0
    %811 = vmatpush1.msra.mxu0 0.0
    %812 = vmatprep.subr.mxu0 0.0
    %813 = vmatpush1.msra.mxu0 0.0
    %814 = vmatprep.subr.mxu0 0.0
    %815 = vmatpush1.msra.mxu0 0.0
    %816 = vmatprep.subr.mxu0 0.0
    %817 = vmatpush1.msra.mxu0 0.0
    %818 = vmatprep.subr.mxu0 0.0
    %819 = vmatpush1.msra.mxu0 0.0
    %820 = vmatprep.subr.mxu0 0.0
    %821 = vmatpush1.msra.mxu0 0.0
    %822 = vmatprep.subr.mxu0 0.0
    %823 = vmatpush1.msra.mxu0 0.0
    %824 = vmatprep.subr.mxu0 0.0
    %825 = vmatpush1.msra.mxu0 0.0
    %826 = vmatprep.mubr.f32.mxu0 0.0
    %827 = vmatmul.mubr.f32.gmra.mrb[0].mxu0 %v760
    %v828 = vpop.f32.mrb[0].mxu0
    %v829 = vadd.f32 0.0, %v828
    %v830 = vpop.f32.mrb[0].mxu0
    %831 = vdwg.mxu0
    %v833 = vsel %vm127, %v756, 0
    %835 = vmatprep.subr.mxu0 0.0
    %836 = vmatpush1.msra.mxu0 %v40
    %837 = vmatprep.subr.mxu0 0.0
    %838 = vmatpush1.msra.mxu0 %v41
    %839 = vmatprep.subr.mxu0 0.0
    %840 = vmatpush1.msra.mxu0 0.0
    %841 = vmatprep.subr.mxu0 0.0
    %842 = vmatpush1.msra.mxu0 0.0
    %843 = vmatprep.subr.mxu0 0.0
    %844 = vmatpush1.msra.mxu0 0.0
    %845 = vmatprep.subr.mxu0 0.0
    %846 = vmatpush1.msra.mxu0 0.0
    %847 = vmatprep.subr.mxu0 0.0
    %848 = vmatpush1.msra.mxu0 0.0
    %849 = vmatprep.subr.mxu0 0.0
    %850 = vmatpush1.msra.mxu0 0.0
    %851 = vmatprep.subr.mxu0 0.0
    %852 = vmatpush1.msra.mxu0 0.0
    %853 = vmatprep.subr.mxu0 0.0
    %854 = vmatpush1.msra.mxu0 0.0
    %855 = vmatprep.subr.mxu0 0.0
    %856 = vmatpush1.msra.mxu0 0.0
    %857 = vmatprep.subr.mxu0 0.0
    %858 = vmatpush1.msra.mxu0 0.0
    %859 = vmatprep.subr.mxu0 0.0
    %860 = vmatpush1.msra.mxu0 0.0
    %861 = vmatprep.subr.mxu0 0.0
    %862 = vmatpush1.msra.mxu0 0.0
    %863 = vmatprep.subr.mxu0 0.0
    %864 = vmatpush1.msra.mxu0 0.0
    %865 = vmatprep.subr.mxu0 0.0
    %866 = vmatpush1.msra.mxu0 0.0
    %867 = vmatprep.subr.mxu0 0.0
    %868 = vmatpush1.msra.mxu0 0.0
    %869 = vmatprep.subr.mxu0 0.0
    %870 = vmatpush1.msra.mxu0 0.0
    %871 = vmatprep.subr.mxu0 0.0
    %872 = vmatpush1.msra.mxu0 0.0
    %873 = vmatprep.subr.mxu0 0.0
    %874 = vmatpush1.msra.mxu0 0.0
    %875 = vmatprep.subr.mxu0 0.0
    %876 = vmatpush1.msra.mxu0 0.0
    %877 = vmatprep.subr.mxu0 0.0
    %878 = vmatpush1.msra.mxu0 0.0
    %879 = vmatprep.subr.mxu0 0.0
    %880 = vmatpush1.msra.mxu0 0.0
    %881 = vmatprep.subr.mxu0 0.0
    %882 = vmatpush1.msra.mxu0 0.0
    %883 = vmatprep.subr.mxu0 0.0
    %884 = vmatpush1.msra.mxu0 0.0
    %885 = vmatprep.subr.mxu0 0.0
    %886 = vmatpush1.msra.mxu0 0.0
    %887 = vmatprep.subr.mxu0 0.0
    %888 = vmatpush1.msra.mxu0 0.0
    %889 = vmatprep.subr.mxu0 0.0
    %890 = vmatpush1.msra.mxu0 0.0
    %891 = vmatprep.subr.mxu0 0.0
    %892 = vmatpush1.msra.mxu0 0.0
    %893 = vmatprep.subr.mxu0 0.0
    %894 = vmatpush1.msra.mxu0 0.0
    %895 = vmatprep.subr.mxu0 0.0
    %896 = vmatpush1.msra.mxu0 0.0
    %897 = vmatprep.subr.mxu0 0.0
    %898 = vmatpush1.msra.mxu0 0.0
    %899 = vmatprep.mubr.f32.mxu0 0.0
    %900 = vmatmul.mubr.f32.gmra.mrb[0].mxu0 %v833
    %v901 = vpop.f32.mrb[0].mxu0
    %v902 = vadd.f32 %v829, %v901
    %v903 = vpop.f32.mrb[0].mxu0
    %904 = vdwg.mxu0
    %v905 = vadd.f32 %v902, %v204
    %v906 = vsub.f32 0.0, %v905
    %v907 = vmul.f32 %v906, 1.442695
    %v908 = vpow.pop %v907
    %v909 = vadd.f32 %v908, 1.0
    %v910 = vrcp.pop %v909
    %v911 = vmul.f32 1.0, %v910
    %v912 = vtanh.pop %v905
    %v913 = vmul.f32 %v911, %v748
    %915 = vrot.lane.b32.xlu0 %v912, 64
    %v916 = vpop.permute.xlu0 %915
    %v918 = vmul.f32 %v911, %v916
    %920 = vrot.lane.b32.xlu0 %v918, 32
    %v921 = vpop.permute.xlu0 %920
    %v923 = vadd.f32 %v913, %v921
    %v924 = vtanh.pop %v923
    %926 = vrot.lane.b32.xlu0 %v924, 64
    %v927 = vpop.permute.xlu0 %926
    %v929 = vmul.f32 %v911, %v927
    %s930 = scalar_lea.vmem [#allocation2], 40
    %v931 = vld [vmem:[%s930] sm:$0xff]
    %933 = vrot.lane.b32.xlu0 %v929, 32
    %v934 = vpop.permute.xlu0 %933
    %v935 = vsel %vm53, %v934, 0
    %937 = vmatprep.subr.mxu0 0.0
    %938 = vmatpush1.msra.mxu0 %v42
    %939 = vmatprep.subr.mxu0 0.0
    %940 = vmatpush1.msra.mxu0 %v43
    %941 = vmatprep.subr.mxu0 0.0
    %942 = vmatpush1.msra.mxu0 %v44
    %943 = vmatprep.subr.mxu0 0.0
    %944 = vmatpush1.msra.mxu0 %v45
    %945 = vmatprep.subr.mxu0 0.0
    %946 = vmatpush1.msra.mxu0 0.0
    %947 = vmatprep.subr.mxu0 0.0
    %948 = vmatpush1.msra.mxu0 0.0
    %949 = vmatprep.subr.mxu0 0.0
    %950 = vmatpush1.msra.mxu0 0.0
    %951 = vmatprep.subr.mxu0 0.0
    %952 = vmatpush1.msra.mxu0 0.0
    %953 = vmatprep.subr.mxu0 0.0
    %954 = vmatpush1.msra.mxu0 0.0
    %955 = vmatprep.subr.mxu0 0.0
    %956 = vmatpush1.msra.mxu0 0.0
    %957 = vmatprep.subr.mxu0 0.0
    %958 = vmatpush1.msra.mxu0 0.0
    %959 = vmatprep.subr.mxu0 0.0
    %960 = vmatpush1.msra.mxu0 0.0
    %961 = vmatprep.subr.mxu0 0.0
    %962 = vmatpush1.msra.mxu0 0.0
    %963 = vmatprep.subr.mxu0 0.0
    %964 = vmatpush1.msra.mxu0 0.0
    %965 = vmatprep.subr.mxu0 0.0
    %966 = vmatpush1.msra.mxu0 0.0
    %967 = vmatprep.subr.mxu0 0.0
    %968 = vmatpush1.msra.mxu0 0.0
    %969 = vmatprep.subr.mxu0 0.0
    %970 = vmatpush1.msra.mxu0 0.0
    %971 = vmatprep.subr.mxu0 0.0
    %972 = vmatpush1.msra.mxu0 0.0
    %973 = vmatprep.subr.mxu0 0.0
    %974 = vmatpush1.msra.mxu0 0.0
    %975 = vmatprep.subr.mxu0 0.0
    %976 = vmatpush1.msra.mxu0 0.0
    %977 = vmatprep.subr.mxu0 0.0
    %978 = vmatpush1.msra.mxu0 0.0
    %979 = vmatprep.subr.mxu0 0.0
    %980 = vmatpush1.msra.mxu0 0.0
    %981 = vmatprep.subr.mxu0 0.0
    %982 = vmatpush1.msra.mxu0 0.0
    %983 = vmatprep.subr.mxu0 0.0
    %984 = vmatpush1.msra.mxu0 0.0
    %985 = vmatprep.subr.mxu0 0.0
    %986 = vmatpush1.msra.mxu0 0.0
    %987 = vmatprep.subr.mxu0 0.0
    %988 = vmatpush1.msra.mxu0 0.0
    %989 = vmatprep.subr.mxu0 0.0
    %990 = vmatpush1.msra.mxu0 0.0
    %991 = vmatprep.subr.mxu0 0.0
    %992 = vmatpush1.msra.mxu0 0.0
    %993 = vmatprep.subr.mxu0 0.0
    %994 = vmatpush1.msra.mxu0 0.0
    %995 = vmatprep.subr.mxu0 0.0
    %996 = vmatpush1.msra.mxu0 0.0
    %997 = vmatprep.subr.mxu0 0.0
    %998 = vmatpush1.msra.mxu0 0.0
    %999 = vmatprep.subr.mxu0 0.0
    %1000 = vmatpush1.msra.mxu0 0.0
    %1001 = vmatprep.mubr.f32.mxu0 0.0
    %1002 = vmatmul.mubr.f32.gmra.mrb[0].mxu0 %v935
    %v1003 = vpop.f32.mrb[0].mxu0
    %v1004 = vadd.f32 0.0, %v1003
    %v1005 = vpop.f32.mrb[0].mxu0
    %1006 = vdwg.mxu0
    %v1008 = vsel %vm127, %v931, 0
    %1010 = vmatprep.subr.mxu0 0.0
    %1011 = vmatpush1.msra.mxu0 %v40
    %1012 = vmatprep.subr.mxu0 0.0
    %1013 = vmatpush1.msra.mxu0 %v41
    %1014 = vmatprep.subr.mxu0 0.0
    %1015 = vmatpush1.msra.mxu0 0.0
    %1016 = vmatprep.subr.mxu0 0.0
    %1017 = vmatpush1.msra.mxu0 0.0
    %1018 = vmatprep.subr.mxu0 0.0
    %1019 = vmatpush1.msra.mxu0 0.0
    %1020 = vmatprep.subr.mxu0 0.0
    %1021 = vmatpush1.msra.mxu0 0.0
    %1022 = vmatprep.subr.mxu0 0.0
    %1023 = vmatpush1.msra.mxu0 0.0
    %1024 = vmatprep.subr.mxu0 0.0
    %1025 = vmatpush1.msra.mxu0 0.0
    %1026 = vmatprep.subr.mxu0 0.0
    %1027 = vmatpush1.msra.mxu0 0.0
    %1028 = vmatprep.subr.mxu0 0.0
    %1029 = vmatpush1.msra.mxu0 0.0
    %1030 = vmatprep.subr.mxu0 0.0
    %1031 = vmatpush1.msra.mxu0 0.0
    %1032 = vmatprep.subr.mxu0 0.0
    %1033 = vmatpush1.msra.mxu0 0.0
    %1034 = vmatprep.subr.mxu0 0.0
    %1035 = vmatpush1.msra.mxu0 0.0
    %1036 = vmatprep.subr.mxu0 0.0
    %1037 = vmatpush1.msra.mxu0 0.0
    %1038 = vmatprep.subr.mxu0 0.0
    %1039 = vmatpush1.msra.mxu0 0.0
    %1040 = vmatprep.subr.mxu0 0.0
    %1041 = vmatpush1.msra.mxu0 0.0
    %1042 = vmatprep.subr.mxu0 0.0
    %1043 = vmatpush1.msra.mxu0 0.0
    %1044 = vmatprep.subr.mxu0 0.0
    %1045 = vmatpush1.msra.mxu0 0.0
    %1046 = vmatprep.subr.mxu0 0.0
    %1047 = vmatpush1.msra.mxu0 0.0
    %1048 = vmatprep.subr.mxu0 0.0
    %1049 = vmatpush1.msra.mxu0 0.0
    %1050 = vmatprep.subr.mxu0 0.0
    %1051 = vmatpush1.msra.mxu0 0.0
    %1052 = vmatprep.subr.mxu0 0.0
    %1053 = vmatpush1.msra.mxu0 0.0
    %1054 = vmatprep.subr.mxu0 0.0
    %1055 = vmatpush1.msra.mxu0 0.0
    %1056 = vmatprep.subr.mxu0 0.0
    %1057 = vmatpush1.msra.mxu0 0.0
    %1058 = vmatprep.subr.mxu0 0.0
    %1059 = vmatpush1.msra.mxu0 0.0
    %1060 = vmatprep.subr.mxu0 0.0
    %1061 = vmatpush1.msra.mxu0 0.0
    %1062 = vmatprep.subr.mxu0 0.0
    %1063 = vmatpush1.msra.mxu0 0.0
    %1064 = vmatprep.subr.mxu0 0.0
    %1065 = vmatpush1.msra.mxu0 0.0
    %1066 = vmatprep.subr.mxu0 0.0
    %1067 = vmatpush1.msra.mxu0 0.0
    %1068 = vmatprep.subr.mxu0 0.0
    %1069 = vmatpush1.msra.mxu0 0.0
    %1070 = vmatprep.subr.mxu0 0.0
    %1071 = vmatpush1.msra.mxu0 0.0
    %1072 = vmatprep.subr.mxu0 0.0
    %1073 = vmatpush1.msra.mxu0 0.0
    %1074 = vmatprep.mubr.f32.mxu0 0.0
    %1075 = vmatmul.mubr.f32.gmra.mrb[0].mxu0 %v1008
    %v1076 = vpop.f32.mrb[0].mxu0
    %v1077 = vadd.f32 %v1004, %v1076
    %v1078 = vpop.f32.mrb[0].mxu0
    %1079 = vdwg.mxu0
    %v1080 = vadd.f32 %v1077, %v204
    %v1081 = vsub.f32 0.0, %v1080
    %v1082 = vmul.f32 %v1081, 1.442695
    %v1083 = vpow.pop %v1082
    %v1084 = vadd.f32 %v1083, 1.0
    %v1085 = vrcp.pop %v1084
    %v1086 = vmul.f32 1.0, %v1085
    %v1087 = vtanh.pop %v1080
    %v1088 = vmul.f32 %v1086, %v923
    %1090 = vrot.lane.b32.xlu0 %v1087, 64
    %v1091 = vpop.permute.xlu0 %1090
    %v1093 = vmul.f32 %v1086, %v1091
    %1095 = vrot.lane.b32.xlu0 %v1093, 32
    %v1096 = vpop.permute.xlu0 %1095
    %v1098 = vadd.f32 %v1088, %v1096
    %v1099 = vtanh.pop %v1098
    %1101 = vrot.lane.b32.xlu0 %v1099, 64
    %v1102 = vpop.permute.xlu0 %1101
    %v1104 = vmul.f32 %v1086, %v1102
    %s1105 = scalar_lea.vmem [#allocation2], 48
    %v1106 = vld [vmem:[%s1105] sm:$0xff]
    %1108 = vrot.lane.b32.xlu0 %v1104, 32
    %v1109 = vpop.permute.xlu0 %1108
    %v1110 = vsel %vm53, %v1109, 0
    %1112 = vmatprep.subr.mxu0 0.0
    %1113 = vmatpush1.msra.mxu0 %v42
    %1114 = vmatprep.subr.mxu0 0.0
    %1115 = vmatpush1.msra.mxu0 %v43
    %1116 = vmatprep.subr.mxu0 0.0
    %1117 = vmatpush1.msra.mxu0 %v44
    %1118 = vmatprep.subr.mxu0 0.0
    %1119 = vmatpush1.msra.mxu0 %v45
    %1120 = vmatprep.subr.mxu0 0.0
    %1121 = vmatpush1.msra.mxu0 0.0
    %1122 = vmatprep.subr.mxu0 0.0
    %1123 = vmatpush1.msra.mxu0 0.0
    %1124 = vmatprep.subr.mxu0 0.0
    %1125 = vmatpush1.msra.mxu0 0.0
    %1126 = vmatprep.subr.mxu0 0.0
    %1127 = vmatpush1.msra.mxu0 0.0
    %1128 = vmatprep.subr.mxu0 0.0
    %1129 = vmatpush1.msra.mxu0 0.0
    %1130 = vmatprep.subr.mxu0 0.0
    %1131 = vmatpush1.msra.mxu0 0.0
    %1132 = vmatprep.subr.mxu0 0.0
    %1133 = vmatpush1.msra.mxu0 0.0
    %1134 = vmatprep.subr.mxu0 0.0
    %1135 = vmatpush1.msra.mxu0 0.0
    %1136 = vmatprep.subr.mxu0 0.0
    %1137 = vmatpush1.msra.mxu0 0.0
    %1138 = vmatprep.subr.mxu0 0.0
    %1139 = vmatpush1.msra.mxu0 0.0
    %1140 = vmatprep.subr.mxu0 0.0
    %1141 = vmatpush1.msra.mxu0 0.0
    %1142 = vmatprep.subr.mxu0 0.0
    %1143 = vmatpush1.msra.mxu0 0.0
    %1144 = vmatprep.subr.mxu0 0.0
    %1145 = vmatpush1.msra.mxu0 0.0
    %1146 = vmatprep.subr.mxu0 0.0
    %1147 = vmatpush1.msra.mxu0 0.0
    %1148 = vmatprep.subr.mxu0 0.0
    %1149 = vmatpush1.msra.mxu0 0.0
    %1150 = vmatprep.subr.mxu0 0.0
    %1151 = vmatpush1.msra.mxu0 0.0
    %1152 = vmatprep.subr.mxu0 0.0
    %1153 = vmatpush1.msra.mxu0 0.0
    %1154 = vmatprep.subr.mxu0 0.0
    %1155 = vmatpush1.msra.mxu0 0.0
    %1156 = vmatprep.subr.mxu0 0.0
    %1157 = vmatpush1.msra.mxu0 0.0
    %1158 = vmatprep.subr.mxu0 0.0
    %1159 = vmatpush1.msra.mxu0 0.0
    %1160 = vmatprep.subr.mxu0 0.0
    %1161 = vmatpush1.msra.mxu0 0.0
    %1162 = vmatprep.subr.mxu0 0.0
    %1163 = vmatpush1.msra.mxu0 0.0
    %1164 = vmatprep.subr.mxu0 0.0
    %1165 = vmatpush1.msra.mxu0 0.0
    %1166 = vmatprep.subr.mxu0 0.0
    %1167 = vmatpush1.msra.mxu0 0.0
    %1168 = vmatprep.subr.mxu0 0.0
    %1169 = vmatpush1.msra.mxu0 0.0
    %1170 = vmatprep.subr.mxu0 0.0
    %1171 = vmatpush1.msra.mxu0 0.0
    %1172 = vmatprep.subr.mxu0 0.0
    %1173 = vmatpush1.msra.mxu0 0.0
    %1174 = vmatprep.subr.mxu0 0.0
    %1175 = vmatpush1.msra.mxu0 0.0
    %1176 = vmatprep.mubr.f32.mxu0 0.0
    %1177 = vmatmul.mubr.f32.gmra.mrb[0].mxu0 %v1110
    %v1178 = vpop.f32.mrb[0].mxu0
    %v1179 = vadd.f32 0.0, %v1178
    %v1180 = vpop.f32.mrb[0].mxu0
    %1181 = vdwg.mxu0
    %v1183 = vsel %vm127, %v1106, 0
    %1185 = vmatprep.subr.mxu0 0.0
    %1186 = vmatpush1.msra.mxu0 %v40
    %1187 = vmatprep.subr.mxu0 0.0
    %1188 = vmatpush1.msra.mxu0 %v41
    %1189 = vmatprep.subr.mxu0 0.0
    %1190 = vmatpush1.msra.mxu0 0.0
    %1191 = vmatprep.subr.mxu0 0.0
    %1192 = vmatpush1.msra.mxu0 0.0
    %1193 = vmatprep.subr.mxu0 0.0
    %1194 = vmatpush1.msra.mxu0 0.0
    %1195 = vmatprep.subr.mxu0 0.0
    %1196 = vmatpush1.msra.mxu0 0.0
    %1197 = vmatprep.subr.mxu0 0.0
    %1198 = vmatpush1.msra.mxu0 0.0
    %1199 = vmatprep.subr.mxu0 0.0
    %1200 = vmatpush1.msra.mxu0 0.0
    %1201 = vmatprep.subr.mxu0 0.0
    %1202 = vmatpush1.msra.mxu0 0.0
    %1203 = vmatprep.subr.mxu0 0.0
    %1204 = vmatpush1.msra.mxu0 0.0
    %1205 = vmatprep.subr.mxu0 0.0
    %1206 = vmatpush1.msra.mxu0 0.0
    %1207 = vmatprep.subr.mxu0 0.0
    %1208 = vmatpush1.msra.mxu0 0.0
    %1209 = vmatprep.subr.mxu0 0.0
    %1210 = vmatpush1.msra.mxu0 0.0
    %1211 = vmatprep.subr.mxu0 0.0
    %1212 = vmatpush1.msra.mxu0 0.0
    %1213 = vmatprep.subr.mxu0 0.0
    %1214 = vmatpush1.msra.mxu0 0.0
    %1215 = vmatprep.subr.mxu0 0.0
    %1216 = vmatpush1.msra.mxu0 0.0
    %1217 = vmatprep.subr.mxu0 0.0
    %1218 = vmatpush1.msra.mxu0 0.0
    %1219 = vmatprep.subr.mxu0 0.0
    %1220 = vmatpush1.msra.mxu0 0.0
    %1221 = vmatprep.subr.mxu0 0.0
    %1222 = vmatpush1.msra.mxu0 0.0
    %1223 = vmatprep.subr.mxu0 0.0
    %1224 = vmatpush1.msra.mxu0 0.0
    %1225 = vmatprep.subr.mxu0 0.0
    %1226 = vmatpush1.msra.mxu0 0.0
    %1227 = vmatprep.subr.mxu0 0.0
    %1228 = vmatpush1.msra.mxu0 0.0
    %1229 = vmatprep.subr.mxu0 0.0
    %1230 = vmatpush1.msra.mxu0 0.0
    %1231 = vmatprep.subr.mxu0 0.0
    %1232 = vmatpush1.msra.mxu0 0.0
    %1233 = vmatprep.subr.mxu0 0.0
    %1234 = vmatpush1.msra.mxu0 0.0
    %1235 = vmatprep.subr.mxu0 0.0
    %1236 = vmatpush1.msra.mxu0 0.0
    %1237 = vmatprep.subr.mxu0 0.0
    %1238 = vmatpush1.msra.mxu0 0.0
    %1239 = vmatprep.subr.mxu0 0.0
    %1240 = vmatpush1.msra.mxu0 0.0
    %1241 = vmatprep.subr.mxu0 0.0
    %1242 = vmatpush1.msra.mxu0 0.0
    %1243 = vmatprep.subr.mxu0 0.0
    %1244 = vmatpush1.msra.mxu0 0.0
    %1245 = vmatprep.subr.mxu0 0.0
    %1246 = vmatpush1.msra.mxu0 0.0
    %1247 = vmatprep.subr.mxu0 0.0
    %1248 = vmatpush1.msra.mxu0 0.0
    %1249 = vmatprep.mubr.f32.mxu0 0.0
    %1250 = vmatmul.mubr.f32.gmra.mrb[0].mxu0 %v1183
    %v1251 = vpop.f32.mrb[0].mxu0
    %v1252 = vadd.f32 %v1179, %v1251
    %v1253 = vpop.f32.mrb[0].mxu0
    %1254 = vdwg.mxu0
    %v1255 = vadd.f32 %v1252, %v204
    %v1256 = vsub.f32 0.0, %v1255
    %v1257 = vmul.f32 %v1256, 1.442695
    %v1258 = vpow.pop %v1257
    %v1259 = vadd.f32 %v1258, 1.0
    %v1260 = vrcp.pop %v1259
    %v1261 = vmul.f32 1.0, %v1260
    %v1262 = vtanh.pop %v1255
    %v1263 = vmul.f32 %v1261, %v1098
    %1265 = vrot.lane.b32.xlu0 %v1262, 64
    %v1266 = vpop.permute.xlu0 %1265
    %v1268 = vmul.f32 %v1261, %v1266
    %1270 = vrot.lane.b32.xlu0 %v1268, 32
    %v1271 = vpop.permute.xlu0 %1270
    %v1273 = vadd.f32 %v1263, %v1271
    %v1274 = vtanh.pop %v1273
    %1276 = vrot.lane.b32.xlu0 %v1274, 64
    %v1277 = vpop.permute.xlu0 %1276
    %v1279 = vmul.f32 %v1261, %v1277
    %s1280 = scalar_lea.vmem [#allocation2], 56
    %v1281 = vld [vmem:[%s1280] sm:$0xff]
    %1283 = vrot.lane.b32.xlu0 %v1279, 32
    %v1284 = vpop.permute.xlu0 %1283
    %v1285 = vsel %vm53, %v1284, 0
    %1287 = vmatprep.subr.mxu0 0.0
    %1288 = vmatpush1.msra.mxu0 %v42
    %1289 = vmatprep.subr.mxu0 0.0
    %1290 = vmatpush1.msra.mxu0 %v43
    %1291 = vmatprep.subr.mxu0 0.0
    %1292 = vmatpush1.msra.mxu0 %v44
    %1293 = vmatprep.subr.mxu0 0.0
    %1294 = vmatpush1.msra.mxu0 %v45
    %1295 = vmatprep.subr.mxu0 0.0
    %1296 = vmatpush1.msra.mxu0 0.0
    %1297 = vmatprep.subr.mxu0 0.0
    %1298 = vmatpush1.msra.mxu0 0.0
    %1299 = vmatprep.subr.mxu0 0.0
    %1300 = vmatpush1.msra.mxu0 0.0
    %1301 = vmatprep.subr.mxu0 0.0
    %1302 = vmatpush1.msra.mxu0 0.0
    %1303 = vmatprep.subr.mxu0 0.0
    %1304 = vmatpush1.msra.mxu0 0.0
    %1305 = vmatprep.subr.mxu0 0.0
    %1306 = vmatpush1.msra.mxu0 0.0
    %1307 = vmatprep.subr.mxu0 0.0
    %1308 = vmatpush1.msra.mxu0 0.0
    %1309 = vmatprep.subr.mxu0 0.0
    %1310 = vmatpush1.msra.mxu0 0.0
    %1311 = vmatprep.subr.mxu0 0.0
    %1312 = vmatpush1.msra.mxu0 0.0
    %1313 = vmatprep.subr.mxu0 0.0
    %1314 = vmatpush1.msra.mxu0 0.0
    %1315 = vmatprep.subr.mxu0 0.0
    %1316 = vmatpush1.msra.mxu0 0.0
    %1317 = vmatprep.subr.mxu0 0.0
    %1318 = vmatpush1.msra.mxu0 0.0
    %1319 = vmatprep.subr.mxu0 0.0
    %1320 = vmatpush1.msra.mxu0 0.0
    %1321 = vmatprep.subr.mxu0 0.0
    %1322 = vmatpush1.msra.mxu0 0.0
    %1323 = vmatprep.subr.mxu0 0.0
    %1324 = vmatpush1.msra.mxu0 0.0
    %1325 = vmatprep.subr.mxu0 0.0
    %1326 = vmatpush1.msra.mxu0 0.0
    %1327 = vmatprep.subr.mxu0 0.0
    %1328 = vmatpush1.msra.mxu0 0.0
    %1329 = vmatprep.subr.mxu0 0.0
    %1330 = vmatpush1.msra.mxu0 0.0
    %1331 = vmatprep.subr.mxu0 0.0
    %1332 = vmatpush1.msra.mxu0 0.0
    %1333 = vmatprep.subr.mxu0 0.0
    %1334 = vmatpush1.msra.mxu0 0.0
    %1335 = vmatprep.subr.mxu0 0.0
    %1336 = vmatpush1.msra.mxu0 0.0
    %1337 = vmatprep.subr.mxu0 0.0
    %1338 = vmatpush1.msra.mxu0 0.0
    %1339 = vmatprep.subr.mxu0 0.0
    %1340 = vmatpush1.msra.mxu0 0.0
    %1341 = vmatprep.subr.mxu0 0.0
    %1342 = vmatpush1.msra.mxu0 0.0
    %1343 = vmatprep.subr.mxu0 0.0
    %1344 = vmatpush1.msra.mxu0 0.0
    %1345 = vmatprep.subr.mxu0 0.0
    %1346 = vmatpush1.msra.mxu0 0.0
    %1347 = vmatprep.subr.mxu0 0.0
    %1348 = vmatpush1.msra.mxu0 0.0
    %1349 = vmatprep.subr.mxu0 0.0
    %1350 = vmatpush1.msra.mxu0 0.0
    %1351 = vmatprep.mubr.f32.mxu0 0.0
    %1352 = vmatmul.mubr.f32.gmra.mrb[0].mxu0 %v1285
    %v1353 = vpop.f32.mrb[0].mxu0
    %v1354 = vadd.f32 0.0, %v1353
    %v1355 = vpop.f32.mrb[0].mxu0
    %1356 = vdwg.mxu0
    %v1358 = vsel %vm127, %v1281, 0
    %1360 = vmatprep.subr.mxu0 0.0
    %1361 = vmatpush1.msra.mxu0 %v40
    %1362 = vmatprep.subr.mxu0 0.0
    %1363 = vmatpush1.msra.mxu0 %v41
    %1364 = vmatprep.subr.mxu0 0.0
    %1365 = vmatpush1.msra.mxu0 0.0
    %1366 = vmatprep.subr.mxu0 0.0
    %1367 = vmatpush1.msra.mxu0 0.0
    %1368 = vmatprep.subr.mxu0 0.0
    %1369 = vmatpush1.msra.mxu0 0.0
    %1370 = vmatprep.subr.mxu0 0.0
    %1371 = vmatpush1.msra.mxu0 0.0
    %1372 = vmatprep.subr.mxu0 0.0
    %1373 = vmatpush1.msra.mxu0 0.0
    %1374 = vmatprep.subr.mxu0 0.0
    %1375 = vmatpush1.msra.mxu0 0.0
    %1376 = vmatprep.subr.mxu0 0.0
    %1377 = vmatpush1.msra.mxu0 0.0
    %1378 = vmatprep.subr.mxu0 0.0
    %1379 = vmatpush1.msra.mxu0 0.0
    %1380 = vmatprep.subr.mxu0 0.0
    %1381 = vmatpush1.msra.mxu0 0.0
    %1382 = vmatprep.subr.mxu0 0.0
    %1383 = vmatpush1.msra.mxu0 0.0
    %1384 = vmatprep.subr.mxu0 0.0
    %1385 = vmatpush1.msra.mxu0 0.0
    %1386 = vmatprep.subr.mxu0 0.0
    %1387 = vmatpush1.msra.mxu0 0.0
    %1388 = vmatprep.subr.mxu0 0.0
    %1389 = vmatpush1.msra.mxu0 0.0
    %1390 = vmatprep.subr.mxu0 0.0
    %1391 = vmatpush1.msra.mxu0 0.0
    %1392 = vmatprep.subr.mxu0 0.0
    %1393 = vmatpush1.msra.mxu0 0.0
    %1394 = vmatprep.subr.mxu0 0.0
    %1395 = vmatpush1.msra.mxu0 0.0
    %1396 = vmatprep.subr.mxu0 0.0
    %1397 = vmatpush1.msra.mxu0 0.0
    %1398 = vmatprep.subr.mxu0 0.0
    %1399 = vmatpush1.msra.mxu0 0.0
    %1400 = vmatprep.subr.mxu0 0.0
    %1401 = vmatpush1.msra.mxu0 0.0
    %1402 = vmatprep.subr.mxu0 0.0
    %1403 = vmatpush1.msra.mxu0 0.0
    %1404 = vmatprep.subr.mxu0 0.0
    %1405 = vmatpush1.msra.mxu0 0.0
    %1406 = vmatprep.subr.mxu0 0.0
    %1407 = vmatpush1.msra.mxu0 0.0
    %1408 = vmatprep.subr.mxu0 0.0
    %1409 = vmatpush1.msra.mxu0 0.0
    %1410 = vmatprep.subr.mxu0 0.0
    %1411 = vmatpush1.msra.mxu0 0.0
    %1412 = vmatprep.subr.mxu0 0.0
    %1413 = vmatpush1.msra.mxu0 0.0
    %1414 = vmatprep.subr.mxu0 0.0
    %1415 = vmatpush1.msra.mxu0 0.0
    %1416 = vmatprep.subr.mxu0 0.0
    %1417 = vmatpush1.msra.mxu0 0.0
    %1418 = vmatprep.subr.mxu0 0.0
    %1419 = vmatpush1.msra.mxu0 0.0
    %1420 = vmatprep.subr.mxu0 0.0
    %1421 = vmatpush1.msra.mxu0 0.0
    %1422 = vmatprep.subr.mxu0 0.0
    %1423 = vmatpush1.msra.mxu0 0.0
    %1424 = vmatprep.mubr.f32.mxu0 0.0
    %1425 = vmatmul.mubr.f32.gmra.mrb[0].mxu0 %v1358
    %v1426 = vpop.f32.mrb[0].mxu0
    %v1427 = vadd.f32 %v1354, %v1426
    %v1428 = vpop.f32.mrb[0].mxu0
    %1429 = vdwg.mxu0
    %v1430 = vadd.f32 %v1427, %v204
    %v1431 = vsub.f32 0.0, %v1430
    %v1432 = vmul.f32 %v1431, 1.442695
    %v1433 = vpow.pop %v1432
    %v1434 = vadd.f32 %v1433, 1.0
    %v1435 = vrcp.pop %v1434
    %v1436 = vmul.f32 1.0, %v1435
    %v1437 = vtanh.pop %v1430
    %v1438 = vmul.f32 %v1436, %v1273
    %1440 = vrot.lane.b32.xlu0 %v1437, 64
    %v1441 = vpop.permute.xlu0 %1440
    %v1443 = vmul.f32 %v1436, %v1441
    %1445 = vrot.lane.b32.xlu0 %v1443, 32
    %v1446 = vpop.permute.xlu0 %1445
    %v1448 = vadd.f32 %v1438, %v1446
    %v1449 = vtanh.pop %v1448
    %1451 = vrot.lane.b32.xlu0 %v1449, 64
    %v1452 = vpop.permute.xlu0 %1451
    %v1454 = vmul.f32 %v1436, %v1452
    %v1455 = vmax.f32 %v1454, 0.0
    %v1456 = vlaneseq
    %v1457 = vshrl.u32 %v1456, 7
    %v1458 = vsub.s32 0, %v1457
    %v1459 = vrot.slane %v51, %v1458
    %1461 = vrot.lane.b32.xlu0 %v1455, 32
    %v1462 = vpop.permute.xlu0 %1461
    %v1463 = vsel %vm53, %v1462, 0
    %1465 = vmatprep.subr.mxu0 0.0
    %1466 = vmatpush1.msra.mxu0 %v47
    %1467 = vmatprep.subr.mxu0 0.0
    %1468 = vmatpush1.msra.mxu0 %v48
    %1469 = vmatprep.subr.mxu0 0.0
    %1470 = vmatpush1.msra.mxu0 %v49
    %1471 = vmatprep.subr.mxu0 0.0
    %1472 = vmatpush1.msra.mxu0 %v50
    %1473 = vmatprep.subr.mxu0 0.0
    %1474 = vmatpush1.msra.mxu0 0.0
    %1475 = vmatprep.subr.mxu0 0.0
    %1476 = vmatpush1.msra.mxu0 0.0
    %1477 = vmatprep.subr.mxu0 0.0
    %1478 = vmatpush1.msra.mxu0 0.0
    %1479 = vmatprep.subr.mxu0 0.0
    %1480 = vmatpush1.msra.mxu0 0.0
    %1481 = vmatprep.subr.mxu0 0.0
    %1482 = vmatpush1.msra.mxu0 0.0
    %1483 = vmatprep.subr.mxu0 0.0
    %1484 = vmatpush1.msra.mxu0 0.0
    %1485 = vmatprep.subr.mxu0 0.0
    %1486 = vmatpush1.msra.mxu0 0.0
    %1487 = vmatprep.subr.mxu0 0.0
    %1488 = vmatpush1.msra.mxu0 0.0
    %1489 = vmatprep.subr.mxu0 0.0
    %1490 = vmatpush1.msra.mxu0 0.0
    %1491 = vmatprep.subr.mxu0 0.0
    %1492 = vmatpush1.msra.mxu0 0.0
    %1493 = vmatprep.subr.mxu0 0.0
    %1494 = vmatpush1.msra.mxu0 0.0
    %1495 = vmatprep.subr.mxu0 0.0
    %1496 = vmatpush1.msra.mxu0 0.0
    %1497 = vmatprep.subr.mxu0 0.0
    %1498 = vmatpush1.msra.mxu0 0.0
    %1499 = vmatprep.subr.mxu0 0.0
    %1500 = vmatpush1.msra.mxu0 0.0
    %1501 = vmatprep.subr.mxu0 0.0
    %1502 = vmatpush1.msra.mxu0 0.0
    %1503 = vmatprep.subr.mxu0 0.0
    %1504 = vmatpush1.msra.mxu0 0.0
    %1505 = vmatprep.subr.mxu0 0.0
    %1506 = vmatpush1.msra.mxu0 0.0
    %1507 = vmatprep.subr.mxu0 0.0
    %1508 = vmatpush1.msra.mxu0 0.0
    %1509 = vmatprep.subr.mxu0 0.0
    %1510 = vmatpush1.msra.mxu0 0.0
    %1511 = vmatprep.subr.mxu0 0.0
    %1512 = vmatpush1.msra.mxu0 0.0
    %1513 = vmatprep.subr.mxu0 0.0
    %1514 = vmatpush1.msra.mxu0 0.0
    %1515 = vmatprep.subr.mxu0 0.0
    %1516 = vmatpush1.msra.mxu0 0.0
    %1517 = vmatprep.subr.mxu0 0.0
    %1518 = vmatpush1.msra.mxu0 0.0
    %1519 = vmatprep.subr.mxu0 0.0
    %1520 = vmatpush1.msra.mxu0 0.0
    %1521 = vmatprep.subr.mxu0 0.0
    %1522 = vmatpush1.msra.mxu0 0.0
    %1523 = vmatprep.subr.mxu0 0.0
    %1524 = vmatpush1.msra.mxu0 0.0
    %1525 = vmatprep.subr.mxu0 0.0
    %1526 = vmatpush1.msra.mxu0 0.0
    %1527 = vmatprep.subr.mxu0 0.0
    %1528 = vmatpush1.msra.mxu0 0.0
    %1529 = vmatprep.mubr.f32.mxu0 0.0
    %1530 = vmatmul.mubr.f32.gmra.mrb[0].mxu0 %v1463
    %v1531 = vpop.f32.mrb[0].mxu0
    %v1532 = vadd.f32 %v1459, %v1531
    %v1533 = vpop.f32.mrb[0].mxu0
    %1534 = vdwg.mxu0
    %1535 = vst [vmem:[#allocation7] sm:$0xff] %v1532
    // Predicated region
    $region18: #{tpu_custom_call.1} parent=1 // pred_check
      _
    $region19: #{tpu_custom_call.1} parent=1 // pred_check_branch
      %1537 = sbr.rel (0) target = $region21
    $region20: #{tpu_custom_call.1} parent=1 // pred_region
      %s1539 = ssub.s32 128, 128
      %1540 = vsyncadd [#allocation4], %s1539
      %s1542 = sshll.u32 [#allocation7], 4
      %s1543 = int_to_ptr.vmem [resolvable:$true] %s1542
      %1545 = dma.vmem_to_hbm [thread:$0]  %s1543, 128, %s2, [#allocation4]
    $region21: #{tpu_custom_call.1} parent=1 // pred_fallthru
      _
    // Predicated region
    $region22: #{tpu_custom_call.1} parent=1 // pred_check
      _
    $region23: #{tpu_custom_call.1} parent=1 // pred_check_branch
      %1547 = sbr.rel (0) target = $region25
    $region24: #{tpu_custom_call.1} parent=1 // pred_region
      %1548 = dma.done [#allocation4], 128
    $region25: #{tpu_custom_call.1} parent=1 // pred_fallthru
      _
    %1549 = vsyncpa [#allocation3], 1
    %1550 = vsyncpa [#allocation6], 1
    %1551 = vsyncpa [#allocation4], 1

</llo_original>
